<compile_context>
chip_gen: v7x
topology: tpu7x:2x2x1
jax: 0.10.0
libtpu: 0.0.40
codegen_flags: <defaults>
</compile_context>

<pallas_src>
import numpy as np
import jax
import jax.numpy as jnp
from jax import lax
from jax.experimental import pallas as pl
from jax.experimental.pallas import tpu as pltpu

# ------------------------- module-consistent config --------------------------
D = 4                  # MLP depth          (module default 8, scaled down)
W = 32                 # per-MLP width      (module default 256, scaled down)
HF = 2 * W             # fused hidden width (map ++ mlp) = 64
INPUT_CH = 8           # input_ch
INPUT_CH_VIEW = 4      # input_ch_view
INPUT_CH_TIME = 2      # input_ch_time
C_TOTAL = INPUT_CH + INPUT_CH_VIEW + INPUT_CH_TIME   # 14
VIEW_IDX = (1,)        # view_layer_idx (< D-1)
TIME_IDX = (1,)        # time_layer_idx (< D-1)
SKIPS = (2,)           # skips          (< D-1)
OUT_MAP = 3            # map output_ch
OUT_MLP = 4            # mlp output_ch + 1
OUT_FUSED = OUT_MAP + OUT_MLP    # 7
OUT_PAD = 8            # fused output rows padded to one sublane group

N_POINTS = 512         # toy batch: 2 parallel 256-lane tiles (feeds both v7x TCs)


def _round_up(x, m):
    return (x + m - 1) // m * m


# Packed-state row layout (== column layout of every fused weight block):
#   [0, HF)                 : fused hidden state h (map 0:W, mlp W:2W)
#   [HF, HF+XT_ROWS)        : x^T = [pts(8); views(4); time(2); pad(2)]
#   [ONES_ROW0, ONES_ROW0+8): ones  (bias rides weight column ONES_ROW0)
#   [.., STATE_ROWS)        : zero padding up to the 128-wide weight K
XT_ROWS = _round_up(C_TOTAL, 8)           # 16
ONES_ROW0 = HF + XT_ROWS                  # 80
COL_PTS = HF                              # 64
COL_VIEWS = HF + INPUT_CH                 # 72
COL_TIME = COL_VIEWS + INPUT_CH_VIEW      # 76
COL_ONES = ONES_ROW0                      # 80
K_SLAB = _round_up(ONES_ROW0 + 8, 128)    # 128
STATE_ROWS = K_SLAB                       # 128
assert ONES_ROW0 + 8 <= K_SLAB


# ---------------------------- layer bookkeeping -------------------------------
def layer_dims(depth, width, ic, icv, ict, view_idx, time_idx, skips, out_ch):
    dims = []
    for i in range(depth):
        cin = ic if i == 0 else width
        if i in skips:
            cin += ic
        if i in view_idx:
            cin += icv
        if i in time_idx:
            cin += ict
        dims.append((cin, out_ch if i == depth - 1 else width))
    return dims


def seg_cols(i, width, ic, icv, ict, view_idx, time_idx, skips):
    """Column ranges inside layer i's (out, in) weight, in torch concat order
    [h, pts(skip), views, time]."""
    segs, c = {}, 0
    base = ic if i == 0 else width
    segs["h"] = (c, c + base); c += base
    if i in skips:
        segs["pts"] = (c, c + ic); c += ic
    if i in view_idx and icv > 0:
        segs["views"] = (c, c + icv); c += icv
    if i in time_idx and ict > 0:
        segs["time"] = (c, c + ict); c += ict
    return segs


def init_torch_linear(key, dims):
    """PyTorch nn.Linear-style init, weights stored (out, in)."""
    params = []
    for cin, cout in dims:
        bound = 1.0 / float(cin) ** 0.5
        key, kw, kb = jax.random.split(key, 3)
        w = jax.random.uniform(kw, (cout, cin), jnp.float32, -bound, bound)
        b = jax.random.uniform(kb, (cout,), jnp.float32, -bound, bound)
        params.append((w, b))
    return params, key


# ------------------------- fuse the two MLPs + pack ---------------------------
def build_fused_slab(map_params, mlp_params):
    """Fuse `map` and `mlp` into one width-HF network; each layer becomes a
    single (HF, K_SLAB) weight block whose bias sits in the ones column.
    Returns a (D, HF, K_SLAB) f32 slab."""
    assert 0 not in SKIPS
    slab = np.zeros((D, HF, K_SLAB), np.float32)
    for i in range(D):
        last = i == D - 1
        om = OUT_MAP if last else W           # rows used by the map half
        ol = OUT_MLP if last else W           # rows used by the mlp half
        r_map = slice(0, om)
        r_mlp = slice(om, om + ol)            # hidden: 32:64, last: 3:7
        wm, bm = (np.asarray(a, np.float32) for a in map_params[i])
        wl, bl = (np.asarray(a, np.float32) for a in mlp_params[i])
        msc = seg_cols(i, W, INPUT_CH, 0, 0, (0,), (0,), SKIPS)
        lsc = seg_cols(i, W, INPUT_CH, INPUT_CH_VIEW, INPUT_CH_TIME,
                       VIEW_IDX, TIME_IDX, SKIPS)
        blk = slab[i]
        # main segment: layer 0 reads pts, later layers read the fused h
        if i == 0:
            blk[r_map, COL_PTS:COL_PTS + INPUT_CH] = wm[:, msc["h"][0]:msc["h"][1]]
            blk[r_mlp, COL_PTS:COL_PTS + INPUT_CH] = wl[:, lsc["h"][0]:lsc["h"][1]]
        else:
            blk[r_map, 0:W] = wm[:, msc["h"][0]:msc["h"][1]]
            blk[r_mlp, W:HF] = wl[:, lsc["h"][0]:lsc["h"][1]]
        # skip-connection pts segment
        if "pts" in msc:
            blk[r_map, COL_PTS:COL_PTS + INPUT_CH] = wm[:, msc["pts"][0]:msc["pts"][1]]
        if "pts" in lsc:
            blk[r_mlp, COL_PTS:COL_PTS + INPUT_CH] = wl[:, lsc["pts"][0]:lsc["pts"][1]]
        # views / time segments (mlp half only; the map half has icv = ict = 0)
        if "views" in lsc:
            blk[r_mlp, COL_VIEWS:COL_VIEWS + INPUT_CH_VIEW] = \
                wl[:, lsc["views"][0]:lsc["views"][1]]
        if "time" in lsc:
            blk[r_mlp, COL_TIME:COL_TIME + INPUT_CH_TIME] = \
                wl[:, lsc["time"][0]:lsc["time"][1]]
        # bias -> the single weight column hit by the ones rows of the state
        blk[r_map, COL_ONES] = bm
        blk[r_mlp, COL_ONES] = bl
    return jnp.asarray(slab)


# ---------------------------------- kernel ------------------------------------
def make_kernel(compute_dtype, *, tile_n, c_in, in_kernel_transpose):
    """One grid step = one TILE_N-wide column block of points."""

    def kernel(x_ref, slab_ref, out_ref, state_ref):
        # ---- build the packed state  [h ; x^T ; ones ; 0]  (128, TILE_N) ----
        if in_kernel_transpose:
            # x arrives in its natural (TILE_N, 14) layout; transpose it on
            # the MXU with an identity contraction over the shared channel
            # axis (same dimension numbers as the flash-attention q.k^T dot).
            x = x_ref[...]                                          # (TILE_N, c)
            rows = lax.broadcasted_iota(jnp.int32, (XT_ROWS, c_in), 0)
            cols = lax.broadcasted_iota(jnp.int32, (XT_ROWS, c_in), 1)
            eye = (rows == cols).astype(x.dtype)                    # (16, c)
            xt = lax.dot_general(eye, x, (((1,), (1,)), ((), ())),
                                 preferred_element_type=jnp.float32)  # (16, TN)
        else:
            xt = x_ref[...].astype(jnp.float32)                     # (16, TN)

        state_ref[0:HF, :] = jnp.zeros((HF, tile_n), compute_dtype)
        state_ref[HF:ONES_ROW0, :] = xt.astype(compute_dtype)
        state_ref[ONES_ROW0:ONES_ROW0 + 8, :] = jnp.ones((8, tile_n),
                                                         compute_dtype)
        state_ref[ONES_ROW0 + 8:STATE_ROWS, :] = jnp.zeros(
            (STATE_ROWS - ONES_ROW0 - 8, tile_n), compute_dtype)

        # ---- D-1 hidden layers: one aligned (64,128)x(128,TILE_N) matmul
        #      each; bias arrives via the ones rows, ReLU on the VPU. ----
        for i in range(D - 1):
            acc = jnp.dot(slab_ref[i], state_ref[...],
                          preferred_element_type=jnp.float32)       # (HF, TN) f32
            state_ref[0:HF, :] = jnp.maximum(acc, 0.0).astype(compute_dtype)

        # ---- final layer: only the 8 output rows (7 real + 1 zero pad) ----
        out = jnp.dot(slab_ref[D - 1, 0:OUT_PAD, :], state_ref[...],
                      preferred_element_type=jnp.float32)            # (8, TN)
        out_ref[...] = out.astype(out_ref.dtype)                     # lane-dense

    return kernel


# --------------------------------- wrapper -------------------------------------
def _default_compute_dtype():
    # bf16 operands (f32 MXU accumulation) on bf16-native MXUs (v6e / v7x);
    # f32 elsewhere (v5e has no bf16 VPU) and on anything we cannot identify.
    try:
        kind = jax.devices()[0].device_kind.lower()
    except Exception:
        return jnp.float32
    if any(tag in kind for tag in ("v6", "v7", "7x")):
        return jnp.bfloat16
    return jnp.float32


def _pick_tile_n(n):
    # Lane-dense tiles: 256 lanes feed the 256-wide v6e/v7x MXU and, at
    # realistic N, still leave >=2 "parallel" grid steps for v7x's two
    # TensorCores; tiny inputs collapse to a single tile.
    return min(_round_up(max(n, 1), 128), 256)


def _pallas_forward(x, slab, n, n_pad, tile_n, compute_dtype, in_kernel_transpose):
    c = x.shape[1]
    if in_kernel_transpose:
        xin = x if n_pad == n else jnp.pad(x, ((0, n_pad - n), (0, 0)))
        x_spec = pl.BlockSpec((tile_n, c), lambda i: (i, 0))
        xt_flops = 2 * XT_ROWS * c
    else:
        # conservative fallback: XLA-side transpose + pad to the 16 x^T rows
        xin = jnp.pad(jnp.transpose(x), ((0, XT_ROWS - c), (0, n_pad - n)))
        x_spec = pl.BlockSpec((XT_ROWS, tile_n), lambda i: (0, i))
        xt_flops = 0

    flops = n_pad * ((D - 1) * 2 * HF * K_SLAB + 2 * OUT_PAD * K_SLAB + xt_flops)
    bytes_accessed = (xin.size * xin.dtype.itemsize
                      + slab.size * slab.dtype.itemsize
                      + OUT_PAD * n_pad * 4)

    return pl.pallas_call(
        make_kernel(compute_dtype, tile_n=tile_n, c_in=c,
                    in_kernel_transpose=in_kernel_transpose),
        out_shape=jax.ShapeDtypeStruct((OUT_PAD, n_pad), jnp.float32),
        grid_spec=pltpu.PrefetchScalarGridSpec(
            num_scalar_prefetch=0,
            grid=(n_pad // tile_n,),
            in_specs=[x_spec,
                      pl.BlockSpec((D, HF, K_SLAB), lambda i: (0, 0, 0))],
            out_specs=pl.BlockSpec((OUT_PAD, tile_n), lambda i: (0, i)),
            scratch_shapes=[pltpu.VMEM((STATE_ROWS, tile_n), compute_dtype)],
        ),
        compiler_params=pltpu.CompilerParams(
            dimension_semantics=("parallel",)),
        cost_estimate=pl.CostEstimate(flops=int(flops), transcendentals=0,
                                      bytes_accessed=int(bytes_accessed)),
    )(xin, slab)


def texture_fuse_forward(x, slab_f32, *, tile_n=None, compute_dtype=None,
                         in_kernel_transpose=True, channels_first_out=False):
    """TextureFuse.forward(x) -> (N, 7) = cat([map_rgb(3), mlp_rgba(4)], -1)."""
    n, c = x.shape
    assert c == C_TOTAL, f"expected {C_TOTAL} input channels, got {c}"
    if compute_dtype is None:
        compute_dtype = _default_compute_dtype()
    if tile_n is None:
        tile_n = _pick_tile_n(n)
    n_pad = pl.cdiv(n, tile_n) * tile_n

    # NOTE: with bf16 operands the input features are rounded to bf16 when
    # stored into the packed state; pass compute_dtype=jnp.float32 if the
    # NeRF positional encodings need full input precision.
    slab = slab_f32.astype(compute_dtype)

    out = None
    if in_kernel_transpose:
        try:
            out = _pallas_forward(x, slab, n, n_pad, tile_n, compute_dtype, True)
        except Exception:
            out = None   # fall back to the always-lowerable XLA transpose path
    if out is None:
        out = _pallas_forward(x, slab, n, n_pad, tile_n, compute_dtype, False)

    if channels_first_out:
        return out[:OUT_FUSED, :n]     # (7, N): for layout-aware consumers
    return out[:OUT_FUSED, :n].T       # (N, 7): module semantics


# ----------------------------- pure-JAX reference ------------------------------
def ref_general_mlp(params, x, ic, icv, ict, view_idx, time_idx, skips):
    pts = x[:, :ic]
    views = x[:, ic:ic + icv]
    time = x[:, ic + icv:ic + icv + ict]
    h = pts
    for i in range(len(params) - 1):
        w, b = params[i]
        if i in skips:
            h = jnp.concatenate([h, pts], -1)
        if i in view_idx and icv > 0:
            h = jnp.concatenate([h, views], -1)
        if i in time_idx and ict > 0:
            h = jnp.concatenate([h, time], -1)
        h = jnp.maximum(h @ w.T + b, 0.0)
    w, b = params[-1]
    return h @ w.T + b


def ref_texture_fuse(x, map_params, mlp_params):
    map_rgb = ref_general_mlp(map_params, x[:, :INPUT_CH], INPUT_CH, 0, 0,
                              (0,), (0,), SKIPS)
    mlp_rgba = ref_general_mlp(mlp_params, x, INPUT_CH, INPUT_CH_VIEW,
                               INPUT_CH_TIME, VIEW_IDX, TIME_IDX, SKIPS)
    return jnp.concatenate([map_rgb, mlp_rgba], axis=-1)


# ------------------------------------ main --------------------------------------
if __name__ == "__main__":
    key = jax.random.PRNGKey(0)

    # self.map = GeneralMLP(D, W, input_ch, 0, 0, skips=skips, output_ch=3)
    map_dims = layer_dims(D, W, INPUT_CH, 0, 0, (0,), (0,), SKIPS, OUT_MAP)
    # self.mlp = GeneralMLP(D, W, input_ch, icv, ict, view_idx, time_idx,
    #                       skips=skips, output_ch=3 + 1)
    mlp_dims = layer_dims(D, W, INPUT_CH, INPUT_CH_VIEW, INPUT_CH_TIME,
                          VIEW_IDX, TIME_IDX, SKIPS, OUT_MLP)

    map_params, key = init_torch_linear(key, map_dims)
    mlp_params, key = init_torch_linear(key, mlp_dims)
    slab_f32 = build_fused_slab(map_params, mlp_params)

    key, kx = jax.random.split(key)
    x = jax.random.normal(kx, (N_POINTS, C_TOTAL), jnp.float32)

    ref = ref_texture_fuse(x, map_params, mlp_params)

    # f32 operand path: bit-for-bit safe default on every generation.
    out_f32 = jax.block_until_ready(
        texture_fuse_forward(x, slab_f32, compute_dtype=jnp.float32))
    assert out_f32.shape == (N_POINTS, OUT_FUSED)
    assert jnp.allclose(out_f32, ref, rtol=1e-4, atol=1e-4), "f32 mismatch"

    # auto dtype: bf16 operands on v6e/v7x (f32 MXU accumulation), f32 elsewhere.
    out_auto = jax.block_until_ready(texture_fuse_forward(x, slab_f32))
    assert out_auto.shape == (N_POINTS, OUT_FUSED)
    assert jnp.allclose(out_auto, ref, rtol=5e-2, atol=5e-2), "auto-dtype mismatch"

    # ragged N exercises the lane-padding path and a multi-step 128-wide grid.
    x_odd = x[:200]
    out_odd = jax.block_until_ready(
        texture_fuse_forward(x_odd, slab_f32, compute_dtype=jnp.float32,
                             tile_n=128))
    assert out_odd.shape == (200, OUT_FUSED)
    assert jnp.allclose(out_odd, ref[:200], rtol=1e-4, atol=1e-4), "padded mismatch"

    print("KERNEL_OK")
</pallas_src>

<mosaic_0001>
module attributes {stable_mosaic.version = 11 : i64} {
  func.func @kernel(%arg0: i32, %arg1: memref<256x14xf32, #tpu.memory_space<vmem>>, %arg2: memref<4x64x128xf32, #tpu.memory_space<vmem>>, %arg3: memref<8x256xf32, #tpu.memory_space<vmem>>, %arg4: memref<128x256xf32, #tpu.memory_space<vmem>>) attributes {dimension_semantics = [#tpu.dimension_semantics<parallel>], iteration_bounds = array<i64: 2>, scalar_prefetch = 0 : i64, scratch_operands = 1 : i64, tpu.core_type = #tpu.core_type<tc>, window_params = [{transform_indices = @transform_0, window_bounds = array<i64: 256, 14>}, {pipeline_mode = #tpu.pipeline_mode<synchronous>, transform_indices = @transform_1, window_bounds = array<i64: 4, 64, 128>}, {transform_indices = @transform_2, window_bounds = array<i64: 8, 256>}]} {
    %c0 = arith.constant 0 : index
    %c0_0 = arith.constant 0 : index
    %0 = vector.load %arg1[%c0, %c0_0] : memref<256x14xf32, #tpu.memory_space<vmem>>, vector<256x14xf32>
    %1 = tpu.iota {dimensions = array<i32: 0>} : vector<16x14xi32>
    %2 = tpu.iota {dimensions = array<i32: 1>} : vector<16x14xi32>
    %3 = arith.cmpi eq, %1, %2 : vector<16x14xi32>
    %4 = arith.extui %3 : vector<16x14xi1> to vector<16x14xi32>
    %5 = arith.sitofp %4 : vector<16x14xi32> to vector<16x14xf32>
    %cst = arith.constant dense<0.000000e+00> : vector<16x256xf32>
    %6 = tpu.matmul %5, %0, %cst {dimension_numbers = #tpu.dot_dimension_numbers<[1], [1], [0], [0], [0, 0, 1, 0], [], []>} : vector<16x14xf32>, vector<256x14xf32>, vector<16x256xf32> -> vector<16x256xf32>
    %cst_1 = arith.constant 0.000000e+00 : f32
    %7 = vector.broadcast %cst_1 : f32 to vector<64x256xf32>
    %c0_2 = arith.constant 0 : index
    %c0_3 = arith.constant 0 : index
    %8 = vector.load %arg4[%c0_2, %c0_3] : memref<128x256xf32, #tpu.memory_space<vmem>>, vector<64x256xf32>
    tpu.vector_store %arg4[%c0_2, %c0_3], %7 {strides = array<i32>} : memref<128x256xf32, #tpu.memory_space<vmem>>, vector<64x256xf32>,
    %c64 = arith.constant 64 : index
    %c0_4 = arith.constant 0 : index
    %9 = vector.load %arg4[%c64, %c0_4] : memref<128x256xf32, #tpu.memory_space<vmem>>, vector<16x256xf32>
    tpu.vector_store %arg4[%c64, %c0_4], %6 {strides = array<i32>} : memref<128x256xf32, #tpu.memory_space<vmem>>, vector<16x256xf32>,
    %cst_5 = arith.constant 1.000000e+00 : f32
    %10 = vector.broadcast %cst_5 : f32 to vector<8x256xf32>
    %c80 = arith.constant 80 : index
    %c0_6 = arith.constant 0 : index
    %11 = vector.load %arg4[%c80, %c0_6] : memref<128x256xf32, #tpu.memory_space<vmem>>, vector<8x256xf32>
    tpu.vector_store %arg4[%c80, %c0_6], %10 {strides = array<i32>} : memref<128x256xf32, #tpu.memory_space<vmem>>, vector<8x256xf32>,
    %cst_7 = arith.constant 0.000000e+00 : f32
    %12 = vector.broadcast %cst_7 : f32 to vector<40x256xf32>
    %c88 = arith.constant 88 : index
    %c0_8 = arith.constant 0 : index
    %13 = vector.load %arg4[%c88, %c0_8] : memref<128x256xf32, #tpu.memory_space<vmem>>, vector<40x256xf32>
    tpu.vector_store %arg4[%c88, %c0_8], %12 {strides = array<i32>} : memref<128x256xf32, #tpu.memory_space<vmem>>, vector<40x256xf32>,
    %c0_9 = arith.constant 0 : index
    %c0_10 = arith.constant 0 : index
    %c0_11 = arith.constant 0 : index
    %14 = vector.load %arg2[%c0_9, %c0_10, %c0_11] : memref<4x64x128xf32, #tpu.memory_space<vmem>>, vector<1x64x128xf32>
    %15 = vector.shape_cast %14 : vector<1x64x128xf32> to vector<64x128xf32>
    %c0_12 = arith.constant 0 : index
    %c0_13 = arith.constant 0 : index
    %16 = vector.load %arg4[%c0_12, %c0_13] : memref<128x256xf32, #tpu.memory_space<vmem>>, vector<128x256xf32>
    %cst_14 = arith.constant dense<0.000000e+00> : vector<64x256xf32>
    %17 = tpu.matmul %15, %16, %cst_14 {dimension_numbers = #tpu.dot_dimension_numbers<[1], [0], [0], [1], [0, 0, 1, 1], [], []>} : vector<64x128xf32>, vector<128x256xf32>, vector<64x256xf32> -> vector<64x256xf32>
    %cst_15 = arith.constant 0.000000e+00 : f32
    %18 = vector.broadcast %cst_15 : f32 to vector<64x256xf32>
    %19 = arith.maximumf %17, %18 : vector<64x256xf32>
    %c0_16 = arith.constant 0 : index
    %c0_17 = arith.constant 0 : index
    %20 = vector.load %arg4[%c0_16, %c0_17] : memref<128x256xf32, #tpu.memory_space<vmem>>, vector<64x256xf32>
    tpu.vector_store %arg4[%c0_16, %c0_17], %19 {strides = array<i32>} : memref<128x256xf32, #tpu.memory_space<vmem>>, vector<64x256xf32>,
    %c1 = arith.constant 1 : index
    %c0_18 = arith.constant 0 : index
    %c0_19 = arith.constant 0 : index
    %21 = vector.load %arg2[%c1, %c0_18, %c0_19] : memref<4x64x128xf32, #tpu.memory_space<vmem>>, vector<1x64x128xf32>
    %22 = vector.shape_cast %21 : vector<1x64x128xf32> to vector<64x128xf32>
    %c0_20 = arith.constant 0 : index
    %c0_21 = arith.constant 0 : index
    %23 = vector.load %arg4[%c0_20, %c0_21] : memref<128x256xf32, #tpu.memory_space<vmem>>, vector<128x256xf32>
    %cst_22 = arith.constant dense<0.000000e+00> : vector<64x256xf32>
    %24 = tpu.matmul %22, %23, %cst_22 {dimension_numbers = #tpu.dot_dimension_numbers<[1], [0], [0], [1], [0, 0, 1, 1], [], []>} : vector<64x128xf32>, vector<128x256xf32>, vector<64x256xf32> -> vector<64x256xf32>
    %cst_23 = arith.constant 0.000000e+00 : f32
    %25 = vector.broadcast %cst_23 : f32 to vector<64x256xf32>
    %26 = arith.maximumf %24, %25 : vector<64x256xf32>
    %c0_24 = arith.constant 0 : index
    %c0_25 = arith.constant 0 : index
    %27 = vector.load %arg4[%c0_24, %c0_25] : memref<128x256xf32, #tpu.memory_space<vmem>>, vector<64x256xf32>
    tpu.vector_store %arg4[%c0_24, %c0_25], %26 {strides = array<i32>} : memref<128x256xf32, #tpu.memory_space<vmem>>, vector<64x256xf32>,
    %c2 = arith.constant 2 : index
    %c0_26 = arith.constant 0 : index
    %c0_27 = arith.constant 0 : index
    %28 = vector.load %arg2[%c2, %c0_26, %c0_27] : memref<4x64x128xf32, #tpu.memory_space<vmem>>, vector<1x64x128xf32>
    %29 = vector.shape_cast %28 : vector<1x64x128xf32> to vector<64x128xf32>
    %c0_28 = arith.constant 0 : index
    %c0_29 = arith.constant 0 : index
    %30 = vector.load %arg4[%c0_28, %c0_29] : memref<128x256xf32, #tpu.memory_space<vmem>>, vector<128x256xf32>
    %cst_30 = arith.constant dense<0.000000e+00> : vector<64x256xf32>
    %31 = tpu.matmul %29, %30, %cst_30 {dimension_numbers = #tpu.dot_dimension_numbers<[1], [0], [0], [1], [0, 0, 1, 1], [], []>} : vector<64x128xf32>, vector<128x256xf32>, vector<64x256xf32> -> vector<64x256xf32>
    %cst_31 = arith.constant 0.000000e+00 : f32
    %32 = vector.broadcast %cst_31 : f32 to vector<64x256xf32>
    %33 = arith.maximumf %31, %32 : vector<64x256xf32>
    %c0_32 = arith.constant 0 : index
    %c0_33 = arith.constant 0 : index
    %34 = vector.load %arg4[%c0_32, %c0_33] : memref<128x256xf32, #tpu.memory_space<vmem>>, vector<64x256xf32>
    tpu.vector_store %arg4[%c0_32, %c0_33], %33 {strides = array<i32>} : memref<128x256xf32, #tpu.memory_space<vmem>>, vector<64x256xf32>,
    %c3 = arith.constant 3 : index
    %c0_34 = arith.constant 0 : index
    %c0_35 = arith.constant 0 : index
    %35 = vector.load %arg2[%c3, %c0_34, %c0_35] : memref<4x64x128xf32, #tpu.memory_space<vmem>>, vector<1x8x128xf32>
    %36 = vector.shape_cast %35 : vector<1x8x128xf32> to vector<8x128xf32>
    %c0_36 = arith.constant 0 : index
    %c0_37 = arith.constant 0 : index
    %37 = vector.load %arg4[%c0_36, %c0_37] : memref<128x256xf32, #tpu.memory_space<vmem>>, vector<128x256xf32>
    %cst_38 = arith.constant dense<0.000000e+00> : vector<8x256xf32>
    %38 = tpu.matmul %36, %37, %cst_38 {dimension_numbers = #tpu.dot_dimension_numbers<[1], [0], [0], [1], [0, 0, 1, 1], [], []>} : vector<8x128xf32>, vector<128x256xf32>, vector<8x256xf32> -> vector<8x256xf32>
    %c0_39 = arith.constant 0 : index
    %c0_40 = arith.constant 0 : index
    %39 = vector.load %arg3[%c0_39, %c0_40] : memref<8x256xf32, #tpu.memory_space<vmem>>, vector<8x256xf32>
    tpu.vector_store %arg3[%c0_39, %c0_40], %38 {strides = array<i32>} : memref<8x256xf32, #tpu.memory_space<vmem>>, vector<8x256xf32>,
    return
  }
  func.func @transform_0(%arg0: i32) -> (i32, i32) {
    %c0_i32 = arith.constant 0 : i32
    %c0_i32_0 = arith.constant 0 : i32
    return %arg0, %c0_i32 : i32, i32
  }
  func.func @transform_1(%arg0: i32) -> (i32, i32, i32) {
    %c0_i32 = arith.constant 0 : i32
    %c0_i32_0 = arith.constant 0 : i32
    %c0_i32_1 = arith.constant 0 : i32
    %c0_i32_2 = arith.constant 0 : i32
    return %c0_i32, %c0_i32_0, %c0_i32_1 : i32, i32, i32
  }
  func.func @transform_2(%arg0: i32) -> (i32, i32) {
    %c0_i32 = arith.constant 0 : i32
    %c0_i32_0 = arith.constant 0 : i32
    return %c0_i32, %arg0 : i32, i32
  }
}

module attributes {stable_mosaic.version = 11 : i64} {
  func.func @kernel(%arg0: i32, %arg1: memref<16x256xf32, #tpu.memory_space<vmem>>, %arg2: memref<4x64x128xf32, #tpu.memory_space<vmem>>, %arg3: memref<8x256xf32, #tpu.memory_space<vmem>>, %arg4: memref<128x256xf32, #tpu.memory_space<vmem>>) attributes {dimension_semantics = [#tpu.dimension_semantics<parallel>], iteration_bounds = array<i64: 2>, scalar_prefetch = 0 : i64, scratch_operands = 1 : i64, tpu.core_type = #tpu.core_type<tc>, window_params = [{transform_indices = @transform_0, window_bounds = array<i64: 16, 256>}, {pipeline_mode = #tpu.pipeline_mode<synchronous>, transform_indices = @transform_1, window_bounds = array<i64: 4, 64, 128>}, {transform_indices = @transform_2, window_bounds = array<i64: 8, 256>}]} {
    %c0 = arith.constant 0 : index
    %c0_0 = arith.constant 0 : index
    %0 = vector.load %arg1[%c0, %c0_0] : memref<16x256xf32, #tpu.memory_space<vmem>>, vector<16x256xf32>
    %cst = arith.constant 0.000000e+00 : f32
    %1 = vector.broadcast %cst : f32 to vector<64x256xf32>
    %c0_1 = arith.constant 0 : index
    %c0_2 = arith.constant 0 : index
    %2 = vector.load %arg4[%c0_1, %c0_2] : memref<128x256xf32, #tpu.memory_space<vmem>>, vector<64x256xf32>
    tpu.vector_store %arg4[%c0_1, %c0_2], %1 {strides = array<i32>} : memref<128x256xf32, #tpu.memory_space<vmem>>, vector<64x256xf32>,
    %c64 = arith.constant 64 : index
    %c0_3 = arith.constant 0 : index
    %3 = vector.load %arg4[%c64, %c0_3] : memref<128x256xf32, #tpu.memory_space<vmem>>, vector<16x256xf32>
    tpu.vector_store %arg4[%c64, %c0_3], %0 {strides = array<i32>} : memref<128x256xf32, #tpu.memory_space<vmem>>, vector<16x256xf32>,
    %cst_4 = arith.constant 1.000000e+00 : f32
    %4 = vector.broadcast %cst_4 : f32 to vector<8x256xf32>
    %c80 = arith.constant 80 : index
    %c0_5 = arith.constant 0 : index
    %5 = vector.load %arg4[%c80, %c0_5] : memref<128x256xf32, #tpu.memory_space<vmem>>, vector<8x256xf32>
    tpu.vector_store %arg4[%c80, %c0_5], %4 {strides = array<i32>} : memref<128x256xf32, #tpu.memory_space<vmem>>, vector<8x256xf32>,
    %cst_6 = arith.constant 0.000000e+00 : f32
    %6 = vector.broadcast %cst_6 : f32 to vector<40x256xf32>
    %c88 = arith.constant 88 : index
    %c0_7 = arith.constant 0 : index
    %7 = vector.load %arg4[%c88, %c0_7] : memref<128x256xf32, #tpu.memory_space<vmem>>, vector<40x256xf32>
    tpu.vector_store %arg4[%c88, %c0_7], %6 {strides = array<i32>} : memref<128x256xf32, #tpu.memory_space<vmem>>, vector<40x256xf32>,
    %c0_8 = arith.constant 0 : index
    %c0_9 = arith.constant 0 : index
    %c0_10 = arith.constant 0 : index
    %8 = vector.load %arg2[%c0_8, %c0_9, %c0_10] : memref<4x64x128xf32, #tpu.memory_space<vmem>>, vector<1x64x128xf32>
    %9 = vector.shape_cast %8 : vector<1x64x128xf32> to vector<64x128xf32>
    %c0_11 = arith.constant 0 : index
    %c0_12 = arith.constant 0 : index
    %10 = vector.load %arg4[%c0_11, %c0_12] : memref<128x256xf32, #tpu.memory_space<vmem>>, vector<128x256xf32>
    %cst_13 = arith.constant dense<0.000000e+00> : vector<64x256xf32>
    %11 = tpu.matmul %9, %10, %cst_13 {dimension_numbers = #tpu.dot_dimension_numbers<[1], [0], [0], [1], [0, 0, 1, 1], [], []>} : vector<64x128xf32>, vector<128x256xf32>, vector<64x256xf32> -> vector<64x256xf32>
    %cst_14 = arith.constant 0.000000e+00 : f32
    %12 = vector.broadcast %cst_14 : f32 to vector<64x256xf32>
    %13 = arith.maximumf %11, %12 : vector<64x256xf32>
    %c0_15 = arith.constant 0 : index
    %c0_16 = arith.constant 0 : index
    %14 = vector.load %arg4[%c0_15, %c0_16] : memref<128x256xf32, #tpu.memory_space<vmem>>, vector<64x256xf32>
    tpu.vector_store %arg4[%c0_15, %c0_16], %13 {strides = array<i32>} : memref<128x256xf32, #tpu.memory_space<vmem>>, vector<64x256xf32>,
    %c1 = arith.constant 1 : index
    %c0_17 = arith.constant 0 : index
    %c0_18 = arith.constant 0 : index
    %15 = vector.load %arg2[%c1, %c0_17, %c0_18] : memref<4x64x128xf32, #tpu.memory_space<vmem>>, vector<1x64x128xf32>
    %16 = vector.shape_cast %15 : vector<1x64x128xf32> to vector<64x128xf32>
    %c0_19 = arith.constant 0 : index
    %c0_20 = arith.constant 0 : index
    %17 = vector.load %arg4[%c0_19, %c0_20] : memref<128x256xf32, #tpu.memory_space<vmem>>, vector<128x256xf32>
    %cst_21 = arith.constant dense<0.000000e+00> : vector<64x256xf32>
    %18 = tpu.matmul %16, %17, %cst_21 {dimension_numbers = #tpu.dot_dimension_numbers<[1], [0], [0], [1], [0, 0, 1, 1], [], []>} : vector<64x128xf32>, vector<128x256xf32>, vector<64x256xf32> -> vector<64x256xf32>
    %cst_22 = arith.constant 0.000000e+00 : f32
    %19 = vector.broadcast %cst_22 : f32 to vector<64x256xf32>
    %20 = arith.maximumf %18, %19 : vector<64x256xf32>
    %c0_23 = arith.constant 0 : index
    %c0_24 = arith.constant 0 : index
    %21 = vector.load %arg4[%c0_23, %c0_24] : memref<128x256xf32, #tpu.memory_space<vmem>>, vector<64x256xf32>
    tpu.vector_store %arg4[%c0_23, %c0_24], %20 {strides = array<i32>} : memref<128x256xf32, #tpu.memory_space<vmem>>, vector<64x256xf32>,
    %c2 = arith.constant 2 : index
    %c0_25 = arith.constant 0 : index
    %c0_26 = arith.constant 0 : index
    %22 = vector.load %arg2[%c2, %c0_25, %c0_26] : memref<4x64x128xf32, #tpu.memory_space<vmem>>, vector<1x64x128xf32>
    %23 = vector.shape_cast %22 : vector<1x64x128xf32> to vector<64x128xf32>
    %c0_27 = arith.constant 0 : index
    %c0_28 = arith.constant 0 : index
    %24 = vector.load %arg4[%c0_27, %c0_28] : memref<128x256xf32, #tpu.memory_space<vmem>>, vector<128x256xf32>
    %cst_29 = arith.constant dense<0.000000e+00> : vector<64x256xf32>
    %25 = tpu.matmul %23, %24, %cst_29 {dimension_numbers = #tpu.dot_dimension_numbers<[1], [0], [0], [1], [0, 0, 1, 1], [], []>} : vector<64x128xf32>, vector<128x256xf32>, vector<64x256xf32> -> vector<64x256xf32>
    %cst_30 = arith.constant 0.000000e+00 : f32
    %26 = vector.broadcast %cst_30 : f32 to vector<64x256xf32>
    %27 = arith.maximumf %25, %26 : vector<64x256xf32>
    %c0_31 = arith.constant 0 : index
    %c0_32 = arith.constant 0 : index
    %28 = vector.load %arg4[%c0_31, %c0_32] : memref<128x256xf32, #tpu.memory_space<vmem>>, vector<64x256xf32>
    tpu.vector_store %arg4[%c0_31, %c0_32], %27 {strides = array<i32>} : memref<128x256xf32, #tpu.memory_space<vmem>>, vector<64x256xf32>,
    %c3 = arith.constant 3 : index
    %c0_33 = arith.constant 0 : index
    %c0_34 = arith.constant 0 : index
    %29 = vector.load %arg2[%c3, %c0_33, %c0_34] : memref<4x64x128xf32, #tpu.memory_space<vmem>>, vector<1x8x128xf32>
    %30 = vector.shape_cast %29 : vector<1x8x128xf32> to vector<8x128xf32>
    %c0_35 = arith.constant 0 : index
    %c0_36 = arith.constant 0 : index
    %31 = vector.load %arg4[%c0_35, %c0_36] : memref<128x256xf32, #tpu.memory_space<vmem>>, vector<128x256xf32>
    %cst_37 = arith.constant dense<0.000000e+00> : vector<8x256xf32>
    %32 = tpu.matmul %30, %31, %cst_37 {dimension_numbers = #tpu.dot_dimension_numbers<[1], [0], [0], [1], [0, 0, 1, 1], [], []>} : vector<8x128xf32>, vector<128x256xf32>, vector<8x256xf32> -> vector<8x256xf32>
    %c0_38 = arith.constant 0 : index
    %c0_39 = arith.constant 0 : index
    %33 = vector.load %arg3[%c0_38, %c0_39] : memref<8x256xf32, #tpu.memory_space<vmem>>, vector<8x256xf32>
    tpu.vector_store %arg3[%c0_38, %c0_39], %32 {strides = array<i32>} : memref<8x256xf32, #tpu.memory_space<vmem>>, vector<8x256xf32>,
    return
  }
  func.func @transform_0(%arg0: i32) -> (i32, i32) {
    %c0_i32 = arith.constant 0 : i32
    %c0_i32_0 = arith.constant 0 : i32
    return %c0_i32, %arg0 : i32, i32
  }
  func.func @transform_1(%arg0: i32) -> (i32, i32, i32) {
    %c0_i32 = arith.constant 0 : i32
    %c0_i32_0 = arith.constant 0 : i32
    %c0_i32_1 = arith.constant 0 : i32
    %c0_i32_2 = arith.constant 0 : i32
    return %c0_i32, %c0_i32_0, %c0_i32_1 : i32, i32, i32
  }
  func.func @transform_2(%arg0: i32) -> (i32, i32) {
    %c0_i32 = arith.constant 0 : i32
    %c0_i32_0 = arith.constant 0 : i32
    return %c0_i32, %arg0 : i32, i32
  }
}

</mosaic_0001>

<llo_original>
// kernel: tpu_custom_call.1
$region0: #{tpu_custom_call.1}
  #allocation0 [shape = 'u32[]', space=smem, size = 0x4, offset = 0x4, fixed_abs, tag = 'smem constant byte address 0x4 - core index']
  #allocation1 [shape = 'u32[144,128]{1,0:T(1,128)}', space=vmem, size = 0x12000, scoped, tag = 'internal scratch']
  #allocation2 [shape = 'f32[128,256]{1,0:T(8,128)}', space=vmem, size = 0x20000, scoped, tag = 'scratch operand']
  %s0 = inlined_call_operand.vmem [shape: f32[512,14], index: 0, kind: input, shape index: {}]
  %s1 = inlined_call_operand.vmem [shape: f32[4,64,128], index: 1, kind: input, shape index: {}]
  %s2 = inlined_call_operand.hbm [shape: f32[8,512], index: 2, kind: output, shape index: {}]
  %s3 = sld [smem:[#allocation0]]
  $region41: #{tpu_custom_call.1} parent=0
    _
  %s5 = ssub.s32 1, %s3
  %s6 = scalar_select 0, %s5, %s3
  $region1: #{tpu_custom_call.1} parent=0
    #allocation3 [shape = 'u8[16384]{0}', space=vmem, size = 0x4000, scoped, tag = 'output window, operand 0']
    #allocation4 [shape = 's32[2]{0}', space=sflag, size = 0x8, scoped, tag = 'scoped memory for tpu_custom_call.1']
    %7 = vsyncpa [#allocation4], 0
    %s8 = scalar_lea.sflag [#allocation4], 1
    %9 = vsyncpa %s8, 0
    loop: start=0, step=1, limit=4
    $region2: #{tpu_custom_call.1} parent=1 // loop_pre_header
      _
    $region3: #{tpu_custom_call.1} parent=1 // loop_header
      %s11 = sphi 0, %s15
      %p12 = scmp.ge.s32.totalorder %s11, 4
      %s21 = sphi 0, %s23
      %s24 = sphi 0, %s21
      %s25 = sphi 0, %s24
      %s41 = sphi 0, %s25
      %s45 = sphi 0, %s45
      %s47 = sphi 0, %s45
      %s48 = sphi 0, %s47
      %s62 = sphi 0, %s48
      %s68 = sphi 0, %s70
      %s71 = sphi 0, %s68
      %s72 = sphi 0, %s71
      %s88 = sphi 0, %s72
    $region4: #{tpu_custom_call.1} parent=1 // loop_header_branch
      %14 = sbr.rel (%p12) target = $region8
    $region5: #{tpu_custom_call.1} parent=1 // loop_body
      %s16 = ssub.s32 %s11, 1
      %s17 = ssub.s32 %s11, 2
      %s18 = sadd.s32 %s11, 1
      %s19 = ssub.s32 %s11, %s18
      %p20 = scmp.eq.s32.totalorder %s19, 0
      %s22 = sadd.s32 %s21, 1
      %s23 = scalar_select %p20, %s21, %s22
      %p26 = pneg %p20
      %p27 = scmp.eq.s32.totalorder %s11, 1
      %p28 = por %p26, %p27
      %p29 = scmp.ne.s32.totalorder %s21, %s24
      %p30 = scmp.eq.s32.totalorder %s11, 0
      %p31 = por %p29, %p30
      %p32 = scmp.ne.s32.totalorder %s21, %s24
      %p33 = scmp.eq.s32.totalorder %s16, 1
      %p34 = por %p32, %p33
      %p35 = scmp.ne.s32.totalorder %s24, %s25
      %p36 = scmp.eq.s32.totalorder %s16, 0
      %p37 = por %p35, %p36
      %p38 = scmp.ne.s32.totalorder %s24, %s25
      %p39 = scmp.eq.s32.totalorder %s17, 1
      %p40 = por %p38, %p39
      %p42 = scmp.ne.s32.totalorder %s25, %s41
      %p43 = scmp.eq.s32.totalorder %s17, 0
      %p44 = por %p42, %p43
      %s46 = sadd.s32 %s45, 1
      %p49 = scmp.eq.s32.totalorder %s11, 1
      %p50 = scmp.ne.s32.totalorder %s45, %s47
      %p51 = scmp.eq.s32.totalorder %s11, 0
      %p52 = por %p50, %p51
      %p53 = scmp.ne.s32.totalorder %s45, %s47
      %p54 = scmp.eq.s32.totalorder %s16, 1
      %p55 = por %p53, %p54
      %p56 = scmp.ne.s32.totalorder %s47, %s48
      %p57 = scmp.eq.s32.totalorder %s16, 0
      %p58 = por %p56, %p57
      %p59 = scmp.ne.s32.totalorder %s47, %s48
      %p60 = scmp.eq.s32.totalorder %s17, 1
      %p61 = por %p59, %p60
      %p63 = scmp.ne.s32.totalorder %s48, %s62
      %p64 = scmp.eq.s32.totalorder %s17, 0
      %p65 = por %p63, %p64
      %s66 = ssub.s32 %s11, %s18
      %p67 = scmp.eq.s32.totalorder %s66, 0
      %s69 = sadd.s32 %s68, 1
      %s70 = scalar_select %p67, %s68, %s69
      %p73 = pneg %p67
      %p74 = scmp.eq.s32.totalorder %s11, 1
      %p75 = por %p73, %p74
      %p76 = scmp.ne.s32.totalorder %s68, %s71
      %p77 = scmp.eq.s32.totalorder %s11, 0
      %p78 = por %p76, %p77
      %p79 = scmp.ne.s32.totalorder %s68, %s71
      %p80 = scmp.eq.s32.totalorder %s16, 1
      %p81 = por %p79, %p80
      %p82 = scmp.ne.s32.totalorder %s71, %s72
      %p83 = scmp.eq.s32.totalorder %s16, 0
      %p84 = por %p82, %p83
      %p85 = scmp.ne.s32.totalorder %s71, %s72
      %p86 = scmp.eq.s32.totalorder %s17, 1
      %p87 = por %p85, %p86
      %p89 = scmp.ne.s32.totalorder %s72, %s88
      %p90 = scmp.eq.s32.totalorder %s17, 0
      %p91 = por %p89, %p90
      %p92 = scmp.le.s32.totalorder 1, %s11
      %p93 = scmp.lt.s32.totalorder %s11, 3
      %p94 = pnand %p92, %p93
      %p95 = pneg %p94
      // Predicated region
      $region9: #{tpu_custom_call.1} parent=5 // pred_check
        _
      $region10: #{tpu_custom_call.1} parent=5 // pred_check_branch
        %97 = sbr.rel (%p94) target = $region12
      $region11: #{tpu_custom_call.1} parent=5 // pred_region
        %s98 = ssub.s32 %s11, 1
        // Predicated region
        $region13: #{tpu_custom_call.1} parent=11 // pred_check
          %p99 = pneg %p58
        $region14: #{tpu_custom_call.1} parent=11 // pred_check_branch
          %101 = sbr.rel (%p99) target = $region16
        $region15: #{tpu_custom_call.1} parent=11 // pred_region
          _
        $region16: #{tpu_custom_call.1} parent=11 // pred_fallthru
          _
      $region12: #{tpu_custom_call.1} parent=5 // pred_fallthru
        _
      %p102 = scmp.lt.s32.totalorder %s11, 2
      // Predicated region
      $region17: #{tpu_custom_call.1} parent=5 // pred_check
        %p103 = pneg %p102
      $region18: #{tpu_custom_call.1} parent=5 // pred_check_branch
        %105 = sbr.rel (%p103) target = $region20
      $region19: #{tpu_custom_call.1} parent=5 // pred_region
        // Predicated region
        $region21: #{tpu_custom_call.1} parent=19 // pred_check
          %p106 = pneg %p31
        $region22: #{tpu_custom_call.1} parent=19 // pred_check_branch
          %108 = sbr.rel (%p106) target = $region24
        $region23: #{tpu_custom_call.1} parent=19 // pred_region
          %s109 = smul.u32 32, %s11
          %p110 = scmp.lt.s32.totalorder %s109, 63
          %s111 = scalar_select %p110, %s109, 63
          %s112 = smul.addr %s111, 8
          %s113 = scalar_lea.vmem %s0, %s112
          %s114 = smul.u32 32, %s11
        $region24: #{tpu_custom_call.1} parent=19 // pred_fallthru
          _
      $region20: #{tpu_custom_call.1} parent=5 // pred_fallthru
        _
      %p115 = scmp.le.s32.totalorder 1, %s11
      %p116 = scmp.lt.s32.totalorder %s11, 3
      %p117 = pnand %p115, %p116
      %p118 = pneg %p117
      // Predicated region
      $region25: #{tpu_custom_call.1} parent=5 // pred_check
        _
      $region26: #{tpu_custom_call.1} parent=5 // pred_check_branch
        %120 = sbr.rel (%p117) target = $region28
      $region27: #{tpu_custom_call.1} parent=5 // pred_region
        %s121 = ssub.s32 %s11, 1
        %s122 = smul.u32 32, %s16
        %p123 = scmp.lt.s32.totalorder %s122, 63
        %s124 = scalar_select %p123, %s122, 63
        %s125 = smul.addr %s124, 8
        %s126 = scalar_lea.vmem %s0, %s125
        %p127 = pneg %p37
        %p128 = pneg %p34
        %p129 = pneg %p58
        %p130 = pneg %p55
        %p131 = pneg %p84
        %p132 = pneg %p81
        %s133 = sand.u32 %s71, 1
        %s134 = scalar_lea.sflag [#allocation4], %s133
        %s135 = sand.u32 %s71, 1
        %s136 = smul.addr %s135, 16
        %s137 = scalar_lea.vmem [#allocation3], %s136
        %s138 = smul.u32 32, %s16
        %p139 = scmp.lt.s32.totalorder %s138, 63
        %s140 = scalar_select %p139, %s138, 63
        %s141 = smul.addr %s140, 8
        %s142 = scalar_lea.vmem %s0, %s141
        %s143 = smul.u32 32, %s16
        %s144 = smul.u32 2, %s16
        %v145 = vld [vmem:[%s142] sm:$0xff]
        %v146 = vld [vmem:[%s142 + $0x8] sm:$0xff]
        %v147 = vld [vmem:[%s142 + $0x10] sm:$0xff]
        %v148 = vld [vmem:[%s142 + $0x18] sm:$0xff]
        %v149 = vld [vmem:[%s142 + $0x20] sm:$0xff]
        %v150 = vld [vmem:[%s142 + $0x28] sm:$0xff]
        %v151 = vld [vmem:[%s142 + $0x30] sm:$0xff]
        %v152 = vld [vmem:[%s142 + $0x38] sm:$0xff]
        %v153 = vld [vmem:[%s142 + $0x40] sm:$0xff]
        %v154 = vld [vmem:[%s142 + $0x48] sm:$0xff]
        %v155 = vld [vmem:[%s142 + $0x50] sm:$0xff]
        %v156 = vld [vmem:[%s142 + $0x58] sm:$0xff]
        %v157 = vld [vmem:[%s142 + $0x60] sm:$0xff]
        %v158 = vld [vmem:[%s142 + $0x68] sm:$0xff]
        %v159 = vld [vmem:[%s142 + $0x70] sm:$0xff]
        %v160 = vld [vmem:[%s142 + $0x78] sm:$0xff]
        %v161 = vld [vmem:[%s142 + $0x80] sm:$0xff]
        %v162 = vld [vmem:[%s142 + $0x88] sm:$0xff]
        %v163 = vld [vmem:[%s142 + $0x90] sm:$0xff]
        %v164 = vld [vmem:[%s142 + $0x98] sm:$0xff]
        %v165 = vld [vmem:[%s142 + $0xa0] sm:$0xff]
        %v166 = vld [vmem:[%s142 + $0xa8] sm:$0xff]
        %v167 = vld [vmem:[%s142 + $0xb0] sm:$0xff]
        %v168 = vld [vmem:[%s142 + $0xb8] sm:$0xff]
        %v169 = vld [vmem:[%s142 + $0xc0] sm:$0xff]
        %v170 = vld [vmem:[%s142 + $0xc8] sm:$0xff]
        %v171 = vld [vmem:[%s142 + $0xd0] sm:$0xff]
        %v172 = vld [vmem:[%s142 + $0xd8] sm:$0xff]
        %v173 = vld [vmem:[%s142 + $0xe0] sm:$0xff]
        %v174 = vld [vmem:[%s142 + $0xe8] sm:$0xff]
        %v175 = vld [vmem:[%s142 + $0xf0] sm:$0xff]
        %v176 = vld [vmem:[%s142 + $0xf8] sm:$0xff]
        %v177 = vlaneseq
        %v178 = vshrl.u32 %v177, 7
        %v179 = vadd.s32 %v178, 8
        %v180 = vlaneseq
        %v181 = vand.u32 %v180, 127
        %vm182 = vcmp.eq.s32.totalorder %v178, %v181
        %vm183 = vcmp.eq.s32.totalorder %v179, %v181
        %v184 = vsel %vm182, 1, 0
        %v185 = vsel %vm183, 1, 0
        %v186 = vcvt.s32.f32 %v184
        %v187 = vcvt.s32.f32 %v185
        %vm188 = vcmask 113664
        %v190 = vsel %vm188, %v186, 0
        %v193 = vsel %vm188, %v187, 0
        %v196 = vsel %vm188, %v145, 0
        %v199 = vsel %vm188, %v146, 0
        %v202 = vsel %vm188, %v147, 0
        %v205 = vsel %vm188, %v148, 0
        %v208 = vsel %vm188, %v149, 0
        %v211 = vsel %vm188, %v150, 0
        %v214 = vsel %vm188, %v151, 0
        %v217 = vsel %vm188, %v152, 0
        %v220 = vsel %vm188, %v153, 0
        %v223 = vsel %vm188, %v154, 0
        %v226 = vsel %vm188, %v155, 0
        %v229 = vsel %vm188, %v156, 0
        %v232 = vsel %vm188, %v157, 0
        %v235 = vsel %vm188, %v158, 0
        %v238 = vsel %vm188, %v159, 0
        %v241 = vsel %vm188, %v160, 0
        %v244 = vsel %vm188, %v161, 0
        %v247 = vsel %vm188, %v162, 0
        %v250 = vsel %vm188, %v163, 0
        %v253 = vsel %vm188, %v164, 0
        %v256 = vsel %vm188, %v165, 0
        %v259 = vsel %vm188, %v166, 0
        %v262 = vsel %vm188, %v167, 0
        %v265 = vsel %vm188, %v168, 0
        %v268 = vsel %vm188, %v169, 0
        %v271 = vsel %vm188, %v170, 0
        %v274 = vsel %vm188, %v171, 0
        %v277 = vsel %vm188, %v172, 0
        %v280 = vsel %vm188, %v173, 0
        %v283 = vsel %vm188, %v174, 0
        %v286 = vsel %vm188, %v175, 0
        %v289 = vsel %vm188, %v176, 0
        %291 = vmatprep.subr.mxu0 0.0
        %292 = vmatpush1.xpose.msra.mxu0 %v196
        %293 = vmatprep.subr.mxu0 0.0
        %294 = vmatpush1.xpose.msra.mxu0 %v199
        %295 = vmatprep.subr.mxu0 0.0
        %296 = vmatpush1.xpose.msra.mxu0 %v202
        %297 = vmatprep.subr.mxu0 0.0
        %298 = vmatpush1.xpose.msra.mxu0 %v205
        %299 = vmatprep.subr.mxu0 0.0
        %300 = vmatpush1.xpose.msra.mxu0 %v208
        %301 = vmatprep.subr.mxu0 0.0
        %302 = vmatpush1.xpose.msra.mxu0 %v211
        %303 = vmatprep.subr.mxu0 0.0
        %304 = vmatpush1.xpose.msra.mxu0 %v214
        %305 = vmatprep.subr.mxu0 0.0
        %306 = vmatpush1.xpose.msra.mxu0 %v217
        %307 = vmatprep.subr.mxu0 0.0
        %308 = vmatpush1.xpose.msra.mxu0 %v220
        %309 = vmatprep.subr.mxu0 0.0
        %310 = vmatpush1.xpose.msra.mxu0 %v223
        %311 = vmatprep.subr.mxu0 0.0
        %312 = vmatpush1.xpose.msra.mxu0 %v226
        %313 = vmatprep.subr.mxu0 0.0
        %314 = vmatpush1.xpose.msra.mxu0 %v229
        %315 = vmatprep.subr.mxu0 0.0
        %316 = vmatpush1.xpose.msra.mxu0 %v232
        %317 = vmatprep.subr.mxu0 0.0
        %318 = vmatpush1.xpose.msra.mxu0 %v235
        %319 = vmatprep.subr.mxu0 0.0
        %320 = vmatpush1.xpose.msra.mxu0 %v238
        %321 = vmatprep.subr.mxu0 0.0
        %322 = vmatpush1.xpose.msra.mxu0 %v241
        %323 = vmatprep.subr.mxu0 0.0
        %324 = vmatpush1.xpose.msra.mxu0 %v244
        %325 = vmatprep.subr.mxu0 0.0
        %326 = vmatpush1.xpose.msra.mxu0 %v247
        %327 = vmatprep.subr.mxu0 0.0
        %328 = vmatpush1.xpose.msra.mxu0 %v250
        %329 = vmatprep.subr.mxu0 0.0
        %330 = vmatpush1.xpose.msra.mxu0 %v253
        %331 = vmatprep.subr.mxu0 0.0
        %332 = vmatpush1.xpose.msra.mxu0 %v256
        %333 = vmatprep.subr.mxu0 0.0
        %334 = vmatpush1.xpose.msra.mxu0 %v259
        %335 = vmatprep.subr.mxu0 0.0
        %336 = vmatpush1.xpose.msra.mxu0 %v262
        %337 = vmatprep.subr.mxu0 0.0
        %338 = vmatpush1.xpose.msra.mxu0 %v265
        %339 = vmatprep.subr.mxu0 0.0
        %340 = vmatpush1.xpose.msra.mxu0 %v268
        %341 = vmatprep.subr.mxu0 0.0
        %342 = vmatpush1.xpose.msra.mxu0 %v271
        %343 = vmatprep.subr.mxu0 0.0
        %344 = vmatpush1.xpose.msra.mxu0 %v274
        %345 = vmatprep.subr.mxu0 0.0
        %346 = vmatpush1.xpose.msra.mxu0 %v277
        %347 = vmatprep.subr.mxu0 0.0
        %348 = vmatpush1.xpose.msra.mxu0 %v280
        %349 = vmatprep.subr.mxu0 0.0
        %350 = vmatpush1.xpose.msra.mxu0 %v283
        %351 = vmatprep.subr.mxu0 0.0
        %352 = vmatpush1.xpose.msra.mxu0 %v286
        %353 = vmatprep.subr.mxu0 0.0
        %354 = vmatpush1.xpose.msra.mxu0 %v289
        %355 = vmatprep.mubr.f32.mxu0 0.0
        %356 = vmatmul.mubr.f32.gmra.mrb[0].mxu0 %v190
        %v357 = vpop.f32.mrb[0].mxu0
        %v358 = vadd.f32 0.0, %v357
        %v359 = vpop.f32.mrb[0].mxu0
        %v360 = vadd.f32 0.0, %v359
        %361 = vmatprep.mubr.f32.mxu0 0.0
        %362 = vmatmul.mubr.f32.gmra.mrb[0].mxu0 %v193
        %v363 = vpop.f32.mrb[0].mxu0
        %v364 = vadd.f32 0.0, %v363
        %v365 = vpop.f32.mrb[0].mxu0
        %v366 = vadd.f32 0.0, %v365
        %367 = vdwg.mxu0
        %368 = vst [vmem:[#allocation2] sm:$0xff] 0.0
        %369 = vst [vmem:[#allocation2 + $0x8] sm:$0xff] 0.0
        %370 = vst [vmem:[#allocation2 + $0x10] sm:$0xff] 0.0
        %371 = vst [vmem:[#allocation2 + $0x18] sm:$0xff] 0.0
        %372 = vst [vmem:[#allocation2 + $0x20] sm:$0xff] 0.0
        %373 = vst [vmem:[#allocation2 + $0x28] sm:$0xff] 0.0
        %374 = vst [vmem:[#allocation2 + $0x30] sm:$0xff] 0.0
        %375 = vst [vmem:[#allocation2 + $0x38] sm:$0xff] 0.0
        %376 = vst [vmem:[#allocation2 + $0x40] sm:$0xff] 0.0
        %377 = vst [vmem:[#allocation2 + $0x48] sm:$0xff] 0.0
        %378 = vst [vmem:[#allocation2 + $0x50] sm:$0xff] 0.0
        %379 = vst [vmem:[#allocation2 + $0x58] sm:$0xff] 0.0
        %380 = vst [vmem:[#allocation2 + $0x60] sm:$0xff] 0.0
        %381 = vst [vmem:[#allocation2 + $0x68] sm:$0xff] 0.0
        %382 = vst [vmem:[#allocation2 + $0x70] sm:$0xff] 0.0
        %383 = vst [vmem:[#allocation2 + $0x78] sm:$0xff] 0.0
        %384 = vst [vmem:[#allocation2 + $0x80] sm:$0xff] %v358
        %385 = vst [vmem:[#allocation2 + $0x88] sm:$0xff] %v360
        %386 = vst [vmem:[#allocation2 + $0x90] sm:$0xff] %v364
        %387 = vst [vmem:[#allocation2 + $0x98] sm:$0xff] %v366
        %388 = vst [vmem:[#allocation2 + $0xa0] sm:$0xff] 1.0
        %389 = vst [vmem:[#allocation2 + $0xa8] sm:$0xff] 1.0
        %390 = vst [vmem:[#allocation2 + $0xb0] sm:$0xff] 0.0
        %391 = vst [vmem:[#allocation2 + $0xb8] sm:$0xff] 0.0
        %392 = vst [vmem:[#allocation2 + $0xc0] sm:$0xff] 0.0
        %393 = vst [vmem:[#allocation2 + $0xc8] sm:$0xff] 0.0
        %394 = vst [vmem:[#allocation2 + $0xd0] sm:$0xff] 0.0
        %395 = vst [vmem:[#allocation2 + $0xd8] sm:$0xff] 0.0
        %396 = vst [vmem:[#allocation2 + $0xe0] sm:$0xff] 0.0
        %397 = vst [vmem:[#allocation2 + $0xe8] sm:$0xff] 0.0
        %398 = vst [vmem:[#allocation2 + $0xf0] sm:$0xff] 0.0
        %399 = vst [vmem:[#allocation2 + $0xf8] sm:$0xff] 0.0
        %v400 = vld [vmem:[%s1] sm:$0xff]
        %v401 = vld [vmem:[%s1 + $0x8] sm:$0xff]
        %v402 = vld [vmem:[%s1 + $0x10] sm:$0xff]
        %v403 = vld [vmem:[%s1 + $0x18] sm:$0xff]
        %v404 = vld [vmem:[%s1 + $0x20] sm:$0xff]
        %v405 = vld [vmem:[%s1 + $0x28] sm:$0xff]
        %v406 = vld [vmem:[%s1 + $0x30] sm:$0xff]
        %v407 = vld [vmem:[%s1 + $0x38] sm:$0xff]
        %v408 = vld [vmem:[#allocation2] sm:$0xff]
        %v409 = vld [vmem:[#allocation2 + $0x8] sm:$0xff]
        %v410 = vld [vmem:[#allocation2 + $0x10] sm:$0xff]
        %v411 = vld [vmem:[#allocation2 + $0x18] sm:$0xff]
        %v412 = vld [vmem:[#allocation2 + $0x20] sm:$0xff]
        %v413 = vld [vmem:[#allocation2 + $0x28] sm:$0xff]
        %v414 = vld [vmem:[#allocation2 + $0x30] sm:$0xff]
        %v415 = vld [vmem:[#allocation2 + $0x38] sm:$0xff]
        %v416 = vld [vmem:[#allocation2 + $0x40] sm:$0xff]
        %v417 = vld [vmem:[#allocation2 + $0x48] sm:$0xff]
        %v418 = vld [vmem:[#allocation2 + $0x50] sm:$0xff]
        %v419 = vld [vmem:[#allocation2 + $0x58] sm:$0xff]
        %v420 = vld [vmem:[#allocation2 + $0x60] sm:$0xff]
        %v421 = vld [vmem:[#allocation2 + $0x68] sm:$0xff]
        %v422 = vld [vmem:[#allocation2 + $0x70] sm:$0xff]
        %v423 = vld [vmem:[#allocation2 + $0x78] sm:$0xff]
        %v424 = vld [vmem:[#allocation2 + $0x80] sm:$0xff]
        %v425 = vld [vmem:[#allocation2 + $0x88] sm:$0xff]
        %v426 = vld [vmem:[#allocation2 + $0x90] sm:$0xff]
        %v427 = vld [vmem:[#allocation2 + $0x98] sm:$0xff]
        %v428 = vld [vmem:[#allocation2 + $0xa0] sm:$0xff]
        %v429 = vld [vmem:[#allocation2 + $0xa8] sm:$0xff]
        %v430 = vld [vmem:[#allocation2 + $0xb0] sm:$0xff]
        %v431 = vld [vmem:[#allocation2 + $0xb8] sm:$0xff]
        %v432 = vld [vmem:[#allocation2 + $0xc0] sm:$0xff]
        %v433 = vld [vmem:[#allocation2 + $0xc8] sm:$0xff]
        %v434 = vld [vmem:[#allocation2 + $0xd0] sm:$0xff]
        %v435 = vld [vmem:[#allocation2 + $0xd8] sm:$0xff]
        %v436 = vld [vmem:[#allocation2 + $0xe0] sm:$0xff]
        %v437 = vld [vmem:[#allocation2 + $0xe8] sm:$0xff]
        %v438 = vld [vmem:[#allocation2 + $0xf0] sm:$0xff]
        %v439 = vld [vmem:[#allocation2 + $0xf8] sm:$0xff]
        %440 = vmatprep.subr.mxu0 %v409
        %441 = vmatpush1.msra.mxu0 %v408
        %442 = vmatprep.subr.mxu0 %v411
        %443 = vmatpush1.msra.mxu0 %v410
        %444 = vmatprep.subr.mxu0 %v413
        %445 = vmatpush1.msra.mxu0 %v412
        %446 = vmatprep.subr.mxu0 %v415
        %447 = vmatpush1.msra.mxu0 %v414
        %448 = vmatprep.subr.mxu0 %v417
        %449 = vmatpush1.msra.mxu0 %v416
        %450 = vmatprep.subr.mxu0 %v419
        %451 = vmatpush1.msra.mxu0 %v418
        %452 = vmatprep.subr.mxu0 %v421
        %453 = vmatpush1.msra.mxu0 %v420
        %454 = vmatprep.subr.mxu0 %v423
        %455 = vmatpush1.msra.mxu0 %v422
        %456 = vmatprep.subr.mxu0 %v425
        %457 = vmatpush1.msra.mxu0 %v424
        %458 = vmatprep.subr.mxu0 %v427
        %459 = vmatpush1.msra.mxu0 %v426
        %460 = vmatprep.subr.mxu0 %v429
        %461 = vmatpush1.msra.mxu0 %v428
        %462 = vmatprep.subr.mxu0 %v431
        %463 = vmatpush1.msra.mxu0 %v430
        %464 = vmatprep.subr.mxu0 %v433
        %465 = vmatpush1.msra.mxu0 %v432
        %466 = vmatprep.subr.mxu0 %v435
        %467 = vmatpush1.msra.mxu0 %v434
        %468 = vmatprep.subr.mxu0 %v437
        %469 = vmatpush1.msra.mxu0 %v436
        %470 = vmatprep.subr.mxu0 %v439
        %471 = vmatpush1.msra.mxu0 %v438
        %472 = vmatprep.subr.mxu0 0.0
        %473 = vmatpush1.msra.mxu0 0.0
        %474 = vmatprep.subr.mxu0 0.0
        %475 = vmatpush1.msra.mxu0 0.0
        %476 = vmatprep.subr.mxu0 0.0
        %477 = vmatpush1.msra.mxu0 0.0
        %478 = vmatprep.subr.mxu0 0.0
        %479 = vmatpush1.msra.mxu0 0.0
        %480 = vmatprep.subr.mxu0 0.0
        %481 = vmatpush1.msra.mxu0 0.0
        %482 = vmatprep.subr.mxu0 0.0
        %483 = vmatpush1.msra.mxu0 0.0
        %484 = vmatprep.subr.mxu0 0.0
        %485 = vmatpush1.msra.mxu0 0.0
        %486 = vmatprep.subr.mxu0 0.0
        %487 = vmatpush1.msra.mxu0 0.0
        %488 = vmatprep.subr.mxu0 0.0
        %489 = vmatpush1.msra.mxu0 0.0
        %490 = vmatprep.subr.mxu0 0.0
        %491 = vmatpush1.msra.mxu0 0.0
        %492 = vmatprep.subr.mxu0 0.0
        %493 = vmatpush1.msra.mxu0 0.0
        %494 = vmatprep.subr.mxu0 0.0
        %495 = vmatpush1.msra.mxu0 0.0
        %496 = vmatprep.subr.mxu0 0.0
        %497 = vmatpush1.msra.mxu0 0.0
        %498 = vmatprep.subr.mxu0 0.0
        %499 = vmatpush1.msra.mxu0 0.0
        %500 = vmatprep.subr.mxu0 0.0
        %501 = vmatpush1.msra.mxu0 0.0
        %502 = vmatprep.subr.mxu0 0.0
        %503 = vmatpush1.msra.mxu0 0.0
        %504 = vmatprep.mubr.f32.mxu0 0.0
        %505 = vmatmul.mubr.f32.gmra.mrb[0].mxu0 %v400
        %v506 = vpop.f32.mrb[0].mxu0
        %v507 = vadd.f32 0.0, %v506
        %v508 = vpop.f32.mrb[0].mxu0
        %v509 = vadd.f32 0.0, %v508
        %510 = vmatprep.mubr.f32.mxu0 0.0
        %511 = vmatmul.mubr.f32.gmra.mrb[0].mxu0 %v401
        %v512 = vpop.f32.mrb[0].mxu0
        %v513 = vadd.f32 0.0, %v512
        %v514 = vpop.f32.mrb[0].mxu0
        %v515 = vadd.f32 0.0, %v514
        %516 = vmatprep.mubr.f32.mxu0 0.0
        %517 = vmatmul.mubr.f32.gmra.mrb[0].mxu0 %v402
        %v518 = vpop.f32.mrb[0].mxu0
        %v519 = vadd.f32 0.0, %v518
        %v520 = vpop.f32.mrb[0].mxu0
        %v521 = vadd.f32 0.0, %v520
        %522 = vmatprep.mubr.f32.mxu0 0.0
        %523 = vmatmul.mubr.f32.gmra.mrb[0].mxu0 %v403
        %v524 = vpop.f32.mrb[0].mxu0
        %v525 = vadd.f32 0.0, %v524
        %v526 = vpop.f32.mrb[0].mxu0
        %v527 = vadd.f32 0.0, %v526
        %528 = vmatprep.mubr.f32.mxu0 0.0
        %529 = vmatmul.mubr.f32.gmra.mrb[0].mxu0 %v404
        %v530 = vpop.f32.mrb[0].mxu0
        %v531 = vadd.f32 0.0, %v530
        %v532 = vpop.f32.mrb[0].mxu0
        %v533 = vadd.f32 0.0, %v532
        %534 = vmatprep.mubr.f32.mxu0 0.0
        %535 = vmatmul.mubr.f32.gmra.mrb[0].mxu0 %v405
        %v536 = vpop.f32.mrb[0].mxu0
        %v537 = vadd.f32 0.0, %v536
        %v538 = vpop.f32.mrb[0].mxu0
        %v539 = vadd.f32 0.0, %v538
        %540 = vmatprep.mubr.f32.mxu0 0.0
        %541 = vmatmul.mubr.f32.gmra.mrb[0].mxu0 %v406
        %v542 = vpop.f32.mrb[0].mxu0
        %v543 = vadd.f32 0.0, %v542
        %v544 = vpop.f32.mrb[0].mxu0
        %v545 = vadd.f32 0.0, %v544
        %546 = vmatprep.mubr.f32.mxu0 0.0
        %547 = vmatmul.mubr.f32.gmra.mrb[0].mxu0 %v407
        %v548 = vpop.f32.mrb[0].mxu0
        %v549 = vadd.f32 0.0, %v548
        %v550 = vpop.f32.mrb[0].mxu0
        %v551 = vadd.f32 0.0, %v550
        %552 = vdwg.mxu0
        %v553 = vmax.f32 %v507, 0.0
        %v554 = vmax.f32 %v509, 0.0
        %v555 = vmax.f32 %v513, 0.0
        %v556 = vmax.f32 %v515, 0.0
        %v557 = vmax.f32 %v519, 0.0
        %v558 = vmax.f32 %v521, 0.0
        %v559 = vmax.f32 %v525, 0.0
        %v560 = vmax.f32 %v527, 0.0
        %v561 = vmax.f32 %v531, 0.0
        %v562 = vmax.f32 %v533, 0.0
        %v563 = vmax.f32 %v537, 0.0
        %v564 = vmax.f32 %v539, 0.0
        %v565 = vmax.f32 %v543, 0.0
        %v566 = vmax.f32 %v545, 0.0
        %v567 = vmax.f32 %v549, 0.0
        %v568 = vmax.f32 %v551, 0.0
        %569 = vst [vmem:[#allocation2] sm:$0xff] %v553
        %570 = vst [vmem:[#allocation2 + $0x8] sm:$0xff] %v554
        %571 = vst [vmem:[#allocation2 + $0x10] sm:$0xff] %v555
        %572 = vst [vmem:[#allocation2 + $0x18] sm:$0xff] %v556
        %573 = vst [vmem:[#allocation2 + $0x20] sm:$0xff] %v557
        %574 = vst [vmem:[#allocation2 + $0x28] sm:$0xff] %v558
        %575 = vst [vmem:[#allocation2 + $0x30] sm:$0xff] %v559
        %576 = vst [vmem:[#allocation2 + $0x38] sm:$0xff] %v560
        %577 = vst [vmem:[#allocation2 + $0x40] sm:$0xff] %v561
        %578 = vst [vmem:[#allocation2 + $0x48] sm:$0xff] %v562
        %579 = vst [vmem:[#allocation2 + $0x50] sm:$0xff] %v563
        %580 = vst [vmem:[#allocation2 + $0x58] sm:$0xff] %v564
        %581 = vst [vmem:[#allocation2 + $0x60] sm:$0xff] %v565
        %582 = vst [vmem:[#allocation2 + $0x68] sm:$0xff] %v566
        %583 = vst [vmem:[#allocation2 + $0x70] sm:$0xff] %v567
        %584 = vst [vmem:[#allocation2 + $0x78] sm:$0xff] %v568
        %s585 = scalar_lea.vmem %s1, 64
        %v586 = vld [vmem:[%s585] sm:$0xff]
        %v587 = vld [vmem:[%s585 + $0x8] sm:$0xff]
        %v588 = vld [vmem:[%s585 + $0x10] sm:$0xff]
        %v589 = vld [vmem:[%s585 + $0x18] sm:$0xff]
        %v590 = vld [vmem:[%s585 + $0x20] sm:$0xff]
        %v591 = vld [vmem:[%s585 + $0x28] sm:$0xff]
        %v592 = vld [vmem:[%s585 + $0x30] sm:$0xff]
        %v593 = vld [vmem:[%s585 + $0x38] sm:$0xff]
        %v594 = vld [vmem:[#allocation2] sm:$0xff]
        %v595 = vld [vmem:[#allocation2 + $0x8] sm:$0xff]
        %v596 = vld [vmem:[#allocation2 + $0x10] sm:$0xff]
        %v597 = vld [vmem:[#allocation2 + $0x18] sm:$0xff]
        %v598 = vld [vmem:[#allocation2 + $0x20] sm:$0xff]
        %v599 = vld [vmem:[#allocation2 + $0x28] sm:$0xff]
        %v600 = vld [vmem:[#allocation2 + $0x30] sm:$0xff]
        %v601 = vld [vmem:[#allocation2 + $0x38] sm:$0xff]
        %v602 = vld [vmem:[#allocation2 + $0x40] sm:$0xff]
        %v603 = vld [vmem:[#allocation2 + $0x48] sm:$0xff]
        %v604 = vld [vmem:[#allocation2 + $0x50] sm:$0xff]
        %v605 = vld [vmem:[#allocation2 + $0x58] sm:$0xff]
        %v606 = vld [vmem:[#allocation2 + $0x60] sm:$0xff]
        %v607 = vld [vmem:[#allocation2 + $0x68] sm:$0xff]
        %v608 = vld [vmem:[#allocation2 + $0x70] sm:$0xff]
        %v609 = vld [vmem:[#allocation2 + $0x78] sm:$0xff]
        %v610 = vld [vmem:[#allocation2 + $0x80] sm:$0xff]
        %v611 = vld [vmem:[#allocation2 + $0x88] sm:$0xff]
        %v612 = vld [vmem:[#allocation2 + $0x90] sm:$0xff]
        %v613 = vld [vmem:[#allocation2 + $0x98] sm:$0xff]
        %v614 = vld [vmem:[#allocation2 + $0xa0] sm:$0xff]
        %v615 = vld [vmem:[#allocation2 + $0xa8] sm:$0xff]
        %v616 = vld [vmem:[#allocation2 + $0xb0] sm:$0xff]
        %v617 = vld [vmem:[#allocation2 + $0xb8] sm:$0xff]
        %v618 = vld [vmem:[#allocation2 + $0xc0] sm:$0xff]
        %v619 = vld [vmem:[#allocation2 + $0xc8] sm:$0xff]
        %v620 = vld [vmem:[#allocation2 + $0xd0] sm:$0xff]
        %v621 = vld [vmem:[#allocation2 + $0xd8] sm:$0xff]
        %v622 = vld [vmem:[#allocation2 + $0xe0] sm:$0xff]
        %v623 = vld [vmem:[#allocation2 + $0xe8] sm:$0xff]
        %v624 = vld [vmem:[#allocation2 + $0xf0] sm:$0xff]
        %v625 = vld [vmem:[#allocation2 + $0xf8] sm:$0xff]
        %626 = vmatprep.subr.mxu0 %v595
        %627 = vmatpush1.msra.mxu0 %v594
        %628 = vmatprep.subr.mxu0 %v597
        %629 = vmatpush1.msra.mxu0 %v596
        %630 = vmatprep.subr.mxu0 %v599
        %631 = vmatpush1.msra.mxu0 %v598
        %632 = vmatprep.subr.mxu0 %v601
        %633 = vmatpush1.msra.mxu0 %v600
        %634 = vmatprep.subr.mxu0 %v603
        %635 = vmatpush1.msra.mxu0 %v602
        %636 = vmatprep.subr.mxu0 %v605
        %637 = vmatpush1.msra.mxu0 %v604
        %638 = vmatprep.subr.mxu0 %v607
        %639 = vmatpush1.msra.mxu0 %v606
        %640 = vmatprep.subr.mxu0 %v609
        %641 = vmatpush1.msra.mxu0 %v608
        %642 = vmatprep.subr.mxu0 %v611
        %643 = vmatpush1.msra.mxu0 %v610
        %644 = vmatprep.subr.mxu0 %v613
        %645 = vmatpush1.msra.mxu0 %v612
        %646 = vmatprep.subr.mxu0 %v615
        %647 = vmatpush1.msra.mxu0 %v614
        %648 = vmatprep.subr.mxu0 %v617
        %649 = vmatpush1.msra.mxu0 %v616
        %650 = vmatprep.subr.mxu0 %v619
        %651 = vmatpush1.msra.mxu0 %v618
        %652 = vmatprep.subr.mxu0 %v621
        %653 = vmatpush1.msra.mxu0 %v620
        %654 = vmatprep.subr.mxu0 %v623
        %655 = vmatpush1.msra.mxu0 %v622
        %656 = vmatprep.subr.mxu0 %v625
        %657 = vmatpush1.msra.mxu0 %v624
        %658 = vmatprep.subr.mxu0 0.0
        %659 = vmatpush1.msra.mxu0 0.0
        %660 = vmatprep.subr.mxu0 0.0
        %661 = vmatpush1.msra.mxu0 0.0
        %662 = vmatprep.subr.mxu0 0.0
        %663 = vmatpush1.msra.mxu0 0.0
        %664 = vmatprep.subr.mxu0 0.0
        %665 = vmatpush1.msra.mxu0 0.0
        %666 = vmatprep.subr.mxu0 0.0
        %667 = vmatpush1.msra.mxu0 0.0
        %668 = vmatprep.subr.mxu0 0.0
        %669 = vmatpush1.msra.mxu0 0.0
        %670 = vmatprep.subr.mxu0 0.0
        %671 = vmatpush1.msra.mxu0 0.0
        %672 = vmatprep.subr.mxu0 0.0
        %673 = vmatpush1.msra.mxu0 0.0
        %674 = vmatprep.subr.mxu0 0.0
        %675 = vmatpush1.msra.mxu0 0.0
        %676 = vmatprep.subr.mxu0 0.0
        %677 = vmatpush1.msra.mxu0 0.0
        %678 = vmatprep.subr.mxu0 0.0
        %679 = vmatpush1.msra.mxu0 0.0
        %680 = vmatprep.subr.mxu0 0.0
        %681 = vmatpush1.msra.mxu0 0.0
        %682 = vmatprep.subr.mxu0 0.0
        %683 = vmatpush1.msra.mxu0 0.0
        %684 = vmatprep.subr.mxu0 0.0
        %685 = vmatpush1.msra.mxu0 0.0
        %686 = vmatprep.subr.mxu0 0.0
        %687 = vmatpush1.msra.mxu0 0.0
        %688 = vmatprep.subr.mxu0 0.0
        %689 = vmatpush1.msra.mxu0 0.0
        %690 = vmatprep.mubr.f32.mxu0 0.0
        %691 = vmatmul.mubr.f32.gmra.mrb[0].mxu0 %v586
        %v692 = vpop.f32.mrb[0].mxu0
        %v693 = vadd.f32 0.0, %v692
        %v694 = vpop.f32.mrb[0].mxu0
        %v695 = vadd.f32 0.0, %v694
        %696 = vmatprep.mubr.f32.mxu0 0.0
        %697 = vmatmul.mubr.f32.gmra.mrb[0].mxu0 %v587
        %v698 = vpop.f32.mrb[0].mxu0
        %v699 = vadd.f32 0.0, %v698
        %v700 = vpop.f32.mrb[0].mxu0
        %v701 = vadd.f32 0.0, %v700
        %702 = vmatprep.mubr.f32.mxu0 0.0
        %703 = vmatmul.mubr.f32.gmra.mrb[0].mxu0 %v588
        %v704 = vpop.f32.mrb[0].mxu0
        %v705 = vadd.f32 0.0, %v704
        %v706 = vpop.f32.mrb[0].mxu0
        %v707 = vadd.f32 0.0, %v706
        %708 = vmatprep.mubr.f32.mxu0 0.0
        %709 = vmatmul.mubr.f32.gmra.mrb[0].mxu0 %v589
        %v710 = vpop.f32.mrb[0].mxu0
        %v711 = vadd.f32 0.0, %v710
        %v712 = vpop.f32.mrb[0].mxu0
        %v713 = vadd.f32 0.0, %v712
        %714 = vmatprep.mubr.f32.mxu0 0.0
        %715 = vmatmul.mubr.f32.gmra.mrb[0].mxu0 %v590
        %v716 = vpop.f32.mrb[0].mxu0
        %v717 = vadd.f32 0.0, %v716
        %v718 = vpop.f32.mrb[0].mxu0
        %v719 = vadd.f32 0.0, %v718
        %720 = vmatprep.mubr.f32.mxu0 0.0
        %721 = vmatmul.mubr.f32.gmra.mrb[0].mxu0 %v591
        %v722 = vpop.f32.mrb[0].mxu0
        %v723 = vadd.f32 0.0, %v722
        %v724 = vpop.f32.mrb[0].mxu0
        %v725 = vadd.f32 0.0, %v724
        %726 = vmatprep.mubr.f32.mxu0 0.0
        %727 = vmatmul.mubr.f32.gmra.mrb[0].mxu0 %v592
        %v728 = vpop.f32.mrb[0].mxu0
        %v729 = vadd.f32 0.0, %v728
        %v730 = vpop.f32.mrb[0].mxu0
        %v731 = vadd.f32 0.0, %v730
        %732 = vmatprep.mubr.f32.mxu0 0.0
        %733 = vmatmul.mubr.f32.gmra.mrb[0].mxu0 %v593
        %v734 = vpop.f32.mrb[0].mxu0
        %v735 = vadd.f32 0.0, %v734
        %v736 = vpop.f32.mrb[0].mxu0
        %v737 = vadd.f32 0.0, %v736
        %738 = vdwg.mxu0
        %v739 = vmax.f32 %v693, 0.0
        %v740 = vmax.f32 %v695, 0.0
        %v741 = vmax.f32 %v699, 0.0
        %v742 = vmax.f32 %v701, 0.0
        %v743 = vmax.f32 %v705, 0.0
        %v744 = vmax.f32 %v707, 0.0
        %v745 = vmax.f32 %v711, 0.0
        %v746 = vmax.f32 %v713, 0.0
        %v747 = vmax.f32 %v717, 0.0
        %v748 = vmax.f32 %v719, 0.0
        %v749 = vmax.f32 %v723, 0.0
        %v750 = vmax.f32 %v725, 0.0
        %v751 = vmax.f32 %v729, 0.0
        %v752 = vmax.f32 %v731, 0.0
        %v753 = vmax.f32 %v735, 0.0
        %v754 = vmax.f32 %v737, 0.0
        %755 = vst [vmem:[#allocation2] sm:$0xff] %v739
        %756 = vst [vmem:[#allocation2 + $0x8] sm:$0xff] %v740
        %757 = vst [vmem:[#allocation2 + $0x10] sm:$0xff] %v741
        %758 = vst [vmem:[#allocation2 + $0x18] sm:$0xff] %v742
        %759 = vst [vmem:[#allocation2 + $0x20] sm:$0xff] %v743
        %760 = vst [vmem:[#allocation2 + $0x28] sm:$0xff] %v744
        %761 = vst [vmem:[#allocation2 + $0x30] sm:$0xff] %v745
        %762 = vst [vmem:[#allocation2 + $0x38] sm:$0xff] %v746
        %763 = vst [vmem:[#allocation2 + $0x40] sm:$0xff] %v747
        %764 = vst [vmem:[#allocation2 + $0x48] sm:$0xff] %v748
        %765 = vst [vmem:[#allocation2 + $0x50] sm:$0xff] %v749
        %766 = vst [vmem:[#allocation2 + $0x58] sm:$0xff] %v750
        %767 = vst [vmem:[#allocation2 + $0x60] sm:$0xff] %v751
        %768 = vst [vmem:[#allocation2 + $0x68] sm:$0xff] %v752
        %769 = vst [vmem:[#allocation2 + $0x70] sm:$0xff] %v753
        %770 = vst [vmem:[#allocation2 + $0x78] sm:$0xff] %v754
        %s771 = scalar_lea.vmem %s1, 128
        %v772 = vld [vmem:[%s771] sm:$0xff]
        %v773 = vld [vmem:[%s771 + $0x8] sm:$0xff]
        %v774 = vld [vmem:[%s771 + $0x10] sm:$0xff]
        %v775 = vld [vmem:[%s771 + $0x18] sm:$0xff]
        %v776 = vld [vmem:[%s771 + $0x20] sm:$0xff]
        %v777 = vld [vmem:[%s771 + $0x28] sm:$0xff]
        %v778 = vld [vmem:[%s771 + $0x30] sm:$0xff]
        %v779 = vld [vmem:[%s771 + $0x38] sm:$0xff]
        %v780 = vld [vmem:[#allocation2] sm:$0xff]
        %v781 = vld [vmem:[#allocation2 + $0x8] sm:$0xff]
        %v782 = vld [vmem:[#allocation2 + $0x10] sm:$0xff]
        %v783 = vld [vmem:[#allocation2 + $0x18] sm:$0xff]
        %v784 = vld [vmem:[#allocation2 + $0x20] sm:$0xff]
        %v785 = vld [vmem:[#allocation2 + $0x28] sm:$0xff]
        %v786 = vld [vmem:[#allocation2 + $0x30] sm:$0xff]
        %v787 = vld [vmem:[#allocation2 + $0x38] sm:$0xff]
        %v788 = vld [vmem:[#allocation2 + $0x40] sm:$0xff]
        %v789 = vld [vmem:[#allocation2 + $0x48] sm:$0xff]
        %v790 = vld [vmem:[#allocation2 + $0x50] sm:$0xff]
        %v791 = vld [vmem:[#allocation2 + $0x58] sm:$0xff]
        %v792 = vld [vmem:[#allocation2 + $0x60] sm:$0xff]
        %v793 = vld [vmem:[#allocation2 + $0x68] sm:$0xff]
        %v794 = vld [vmem:[#allocation2 + $0x70] sm:$0xff]
        %v795 = vld [vmem:[#allocation2 + $0x78] sm:$0xff]
        %v796 = vld [vmem:[#allocation2 + $0x80] sm:$0xff]
        %v797 = vld [vmem:[#allocation2 + $0x88] sm:$0xff]
        %v798 = vld [vmem:[#allocation2 + $0x90] sm:$0xff]
        %v799 = vld [vmem:[#allocation2 + $0x98] sm:$0xff]
        %v800 = vld [vmem:[#allocation2 + $0xa0] sm:$0xff]
        %v801 = vld [vmem:[#allocation2 + $0xa8] sm:$0xff]
        %v802 = vld [vmem:[#allocation2 + $0xb0] sm:$0xff]
        %v803 = vld [vmem:[#allocation2 + $0xb8] sm:$0xff]
        %v804 = vld [vmem:[#allocation2 + $0xc0] sm:$0xff]
        %v805 = vld [vmem:[#allocation2 + $0xc8] sm:$0xff]
        %v806 = vld [vmem:[#allocation2 + $0xd0] sm:$0xff]
        %v807 = vld [vmem:[#allocation2 + $0xd8] sm:$0xff]
        %v808 = vld [vmem:[#allocation2 + $0xe0] sm:$0xff]
        %v809 = vld [vmem:[#allocation2 + $0xe8] sm:$0xff]
        %v810 = vld [vmem:[#allocation2 + $0xf0] sm:$0xff]
        %v811 = vld [vmem:[#allocation2 + $0xf8] sm:$0xff]
        %812 = vmatprep.subr.mxu0 %v781
        %813 = vmatpush1.msra.mxu0 %v780
        %814 = vmatprep.subr.mxu0 %v783
        %815 = vmatpush1.msra.mxu0 %v782
        %816 = vmatprep.subr.mxu0 %v785
        %817 = vmatpush1.msra.mxu0 %v784
        %818 = vmatprep.subr.mxu0 %v787
        %819 = vmatpush1.msra.mxu0 %v786
        %820 = vmatprep.subr.mxu0 %v789
        %821 = vmatpush1.msra.mxu0 %v788
        %822 = vmatprep.subr.mxu0 %v791
        %823 = vmatpush1.msra.mxu0 %v790
        %824 = vmatprep.subr.mxu0 %v793
        %825 = vmatpush1.msra.mxu0 %v792
        %826 = vmatprep.subr.mxu0 %v795
        %827 = vmatpush1.msra.mxu0 %v794
        %828 = vmatprep.subr.mxu0 %v797
        %829 = vmatpush1.msra.mxu0 %v796
        %830 = vmatprep.subr.mxu0 %v799
        %831 = vmatpush1.msra.mxu0 %v798
        %832 = vmatprep.subr.mxu0 %v801
        %833 = vmatpush1.msra.mxu0 %v800
        %834 = vmatprep.subr.mxu0 %v803
        %835 = vmatpush1.msra.mxu0 %v802
        %836 = vmatprep.subr.mxu0 %v805
        %837 = vmatpush1.msra.mxu0 %v804
        %838 = vmatprep.subr.mxu0 %v807
        %839 = vmatpush1.msra.mxu0 %v806
        %840 = vmatprep.subr.mxu0 %v809
        %841 = vmatpush1.msra.mxu0 %v808
        %842 = vmatprep.subr.mxu0 %v811
        %843 = vmatpush1.msra.mxu0 %v810
        %844 = vmatprep.subr.mxu0 0.0
        %845 = vmatpush1.msra.mxu0 0.0
        %846 = vmatprep.subr.mxu0 0.0
        %847 = vmatpush1.msra.mxu0 0.0
        %848 = vmatprep.subr.mxu0 0.0
        %849 = vmatpush1.msra.mxu0 0.0
        %850 = vmatprep.subr.mxu0 0.0
        %851 = vmatpush1.msra.mxu0 0.0
        %852 = vmatprep.subr.mxu0 0.0
        %853 = vmatpush1.msra.mxu0 0.0
        %854 = vmatprep.subr.mxu0 0.0
        %855 = vmatpush1.msra.mxu0 0.0
        %856 = vmatprep.subr.mxu0 0.0
        %857 = vmatpush1.msra.mxu0 0.0
        %858 = vmatprep.subr.mxu0 0.0
        %859 = vmatpush1.msra.mxu0 0.0
        %860 = vmatprep.subr.mxu0 0.0
        %861 = vmatpush1.msra.mxu0 0.0
        %862 = vmatprep.subr.mxu0 0.0
        %863 = vmatpush1.msra.mxu0 0.0
        %864 = vmatprep.subr.mxu0 0.0
        %865 = vmatpush1.msra.mxu0 0.0
        %866 = vmatprep.subr.mxu0 0.0
        %867 = vmatpush1.msra.mxu0 0.0
        %868 = vmatprep.subr.mxu0 0.0
        %869 = vmatpush1.msra.mxu0 0.0
        %870 = vmatprep.subr.mxu0 0.0
        %871 = vmatpush1.msra.mxu0 0.0
        %872 = vmatprep.subr.mxu0 0.0
        %873 = vmatpush1.msra.mxu0 0.0
        %874 = vmatprep.subr.mxu0 0.0
        %875 = vmatpush1.msra.mxu0 0.0
        %876 = vmatprep.mubr.f32.mxu0 0.0
        %877 = vmatmul.mubr.f32.gmra.mrb[0].mxu0 %v772
        %v878 = vpop.f32.mrb[0].mxu0
        %v879 = vadd.f32 0.0, %v878
        %v880 = vpop.f32.mrb[0].mxu0
        %v881 = vadd.f32 0.0, %v880
        %882 = vmatprep.mubr.f32.mxu0 0.0
        %883 = vmatmul.mubr.f32.gmra.mrb[0].mxu0 %v773
        %v884 = vpop.f32.mrb[0].mxu0
        %v885 = vadd.f32 0.0, %v884
        %v886 = vpop.f32.mrb[0].mxu0
        %v887 = vadd.f32 0.0, %v886
        %888 = vmatprep.mubr.f32.mxu0 0.0
        %889 = vmatmul.mubr.f32.gmra.mrb[0].mxu0 %v774
        %v890 = vpop.f32.mrb[0].mxu0
        %v891 = vadd.f32 0.0, %v890
        %v892 = vpop.f32.mrb[0].mxu0
        %v893 = vadd.f32 0.0, %v892
        %894 = vmatprep.mubr.f32.mxu0 0.0
        %895 = vmatmul.mubr.f32.gmra.mrb[0].mxu0 %v775
        %v896 = vpop.f32.mrb[0].mxu0
        %v897 = vadd.f32 0.0, %v896
        %v898 = vpop.f32.mrb[0].mxu0
        %v899 = vadd.f32 0.0, %v898
        %900 = vmatprep.mubr.f32.mxu0 0.0
        %901 = vmatmul.mubr.f32.gmra.mrb[0].mxu0 %v776
        %v902 = vpop.f32.mrb[0].mxu0
        %v903 = vadd.f32 0.0, %v902
        %v904 = vpop.f32.mrb[0].mxu0
        %v905 = vadd.f32 0.0, %v904
        %906 = vmatprep.mubr.f32.mxu0 0.0
        %907 = vmatmul.mubr.f32.gmra.mrb[0].mxu0 %v777
        %v908 = vpop.f32.mrb[0].mxu0
        %v909 = vadd.f32 0.0, %v908
        %v910 = vpop.f32.mrb[0].mxu0
        %v911 = vadd.f32 0.0, %v910
        %912 = vmatprep.mubr.f32.mxu0 0.0
        %913 = vmatmul.mubr.f32.gmra.mrb[0].mxu0 %v778
        %v914 = vpop.f32.mrb[0].mxu0
        %v915 = vadd.f32 0.0, %v914
        %v916 = vpop.f32.mrb[0].mxu0
        %v917 = vadd.f32 0.0, %v916
        %918 = vmatprep.mubr.f32.mxu0 0.0
        %919 = vmatmul.mubr.f32.gmra.mrb[0].mxu0 %v779
        %v920 = vpop.f32.mrb[0].mxu0
        %v921 = vadd.f32 0.0, %v920
        %v922 = vpop.f32.mrb[0].mxu0
        %v923 = vadd.f32 0.0, %v922
        %924 = vdwg.mxu0
        %v925 = vmax.f32 %v879, 0.0
        %v926 = vmax.f32 %v881, 0.0
        %v927 = vmax.f32 %v885, 0.0
        %v928 = vmax.f32 %v887, 0.0
        %v929 = vmax.f32 %v891, 0.0
        %v930 = vmax.f32 %v893, 0.0
        %v931 = vmax.f32 %v897, 0.0
        %v932 = vmax.f32 %v899, 0.0
        %v933 = vmax.f32 %v903, 0.0
        %v934 = vmax.f32 %v905, 0.0
        %v935 = vmax.f32 %v909, 0.0
        %v936 = vmax.f32 %v911, 0.0
        %v937 = vmax.f32 %v915, 0.0
        %v938 = vmax.f32 %v917, 0.0
        %v939 = vmax.f32 %v921, 0.0
        %v940 = vmax.f32 %v923, 0.0
        %941 = vst [vmem:[#allocation2] sm:$0xff] %v925
        %942 = vst [vmem:[#allocation2 + $0x8] sm:$0xff] %v926
        %943 = vst [vmem:[#allocation2 + $0x10] sm:$0xff] %v927
        %944 = vst [vmem:[#allocation2 + $0x18] sm:$0xff] %v928
        %945 = vst [vmem:[#allocation2 + $0x20] sm:$0xff] %v929
        %946 = vst [vmem:[#allocation2 + $0x28] sm:$0xff] %v930
        %947 = vst [vmem:[#allocation2 + $0x30] sm:$0xff] %v931
        %948 = vst [vmem:[#allocation2 + $0x38] sm:$0xff] %v932
        %949 = vst [vmem:[#allocation2 + $0x40] sm:$0xff] %v933
        %950 = vst [vmem:[#allocation2 + $0x48] sm:$0xff] %v934
        %951 = vst [vmem:[#allocation2 + $0x50] sm:$0xff] %v935
        %952 = vst [vmem:[#allocation2 + $0x58] sm:$0xff] %v936
        %953 = vst [vmem:[#allocation2 + $0x60] sm:$0xff] %v937
        %954 = vst [vmem:[#allocation2 + $0x68] sm:$0xff] %v938
        %955 = vst [vmem:[#allocation2 + $0x70] sm:$0xff] %v939
        %956 = vst [vmem:[#allocation2 + $0x78] sm:$0xff] %v940
        %s957 = scalar_lea.vmem %s1, 192
        %v958 = vld [vmem:[%s957] sm:$0xff]
        %v959 = vld [vmem:[#allocation2] sm:$0xff]
        %v960 = vld [vmem:[#allocation2 + $0x8] sm:$0xff]
        %v961 = vld [vmem:[#allocation2 + $0x10] sm:$0xff]
        %v962 = vld [vmem:[#allocation2 + $0x18] sm:$0xff]
        %v963 = vld [vmem:[#allocation2 + $0x20] sm:$0xff]
        %v964 = vld [vmem:[#allocation2 + $0x28] sm:$0xff]
        %v965 = vld [vmem:[#allocation2 + $0x30] sm:$0xff]
        %v966 = vld [vmem:[#allocation2 + $0x38] sm:$0xff]
        %v967 = vld [vmem:[#allocation2 + $0x40] sm:$0xff]
        %v968 = vld [vmem:[#allocation2 + $0x48] sm:$0xff]
        %v969 = vld [vmem:[#allocation2 + $0x50] sm:$0xff]
        %v970 = vld [vmem:[#allocation2 + $0x58] sm:$0xff]
        %v971 = vld [vmem:[#allocation2 + $0x60] sm:$0xff]
        %v972 = vld [vmem:[#allocation2 + $0x68] sm:$0xff]
        %v973 = vld [vmem:[#allocation2 + $0x70] sm:$0xff]
        %v974 = vld [vmem:[#allocation2 + $0x78] sm:$0xff]
        %v975 = vld [vmem:[#allocation2 + $0x80] sm:$0xff]
        %v976 = vld [vmem:[#allocation2 + $0x88] sm:$0xff]
        %v977 = vld [vmem:[#allocation2 + $0x90] sm:$0xff]
        %v978 = vld [vmem:[#allocation2 + $0x98] sm:$0xff]
        %v979 = vld [vmem:[#allocation2 + $0xa0] sm:$0xff]
        %v980 = vld [vmem:[#allocation2 + $0xa8] sm:$0xff]
        %v981 = vld [vmem:[#allocation2 + $0xb0] sm:$0xff]
        %v982 = vld [vmem:[#allocation2 + $0xb8] sm:$0xff]
        %v983 = vld [vmem:[#allocation2 + $0xc0] sm:$0xff]
        %v984 = vld [vmem:[#allocation2 + $0xc8] sm:$0xff]
        %v985 = vld [vmem:[#allocation2 + $0xd0] sm:$0xff]
        %v986 = vld [vmem:[#allocation2 + $0xd8] sm:$0xff]
        %v987 = vld [vmem:[#allocation2 + $0xe0] sm:$0xff]
        %v988 = vld [vmem:[#allocation2 + $0xe8] sm:$0xff]
        %v989 = vld [vmem:[#allocation2 + $0xf0] sm:$0xff]
        %v990 = vld [vmem:[#allocation2 + $0xf8] sm:$0xff]
        %991 = vmatprep.subr.mxu0 %v960
        %992 = vmatpush1.msra.mxu0 %v959
        %993 = vmatprep.subr.mxu0 %v962
        %994 = vmatpush1.msra.mxu0 %v961
        %995 = vmatprep.subr.mxu0 %v964
        %996 = vmatpush1.msra.mxu0 %v963
        %997 = vmatprep.subr.mxu0 %v966
        %998 = vmatpush1.msra.mxu0 %v965
        %999 = vmatprep.subr.mxu0 %v968
        %1000 = vmatpush1.msra.mxu0 %v967
        %1001 = vmatprep.subr.mxu0 %v970
        %1002 = vmatpush1.msra.mxu0 %v969
        %1003 = vmatprep.subr.mxu0 %v972
        %1004 = vmatpush1.msra.mxu0 %v971
        %1005 = vmatprep.subr.mxu0 %v974
        %1006 = vmatpush1.msra.mxu0 %v973
        %1007 = vmatprep.subr.mxu0 %v976
        %1008 = vmatpush1.msra.mxu0 %v975
        %1009 = vmatprep.subr.mxu0 %v978
        %1010 = vmatpush1.msra.mxu0 %v977
        %1011 = vmatprep.subr.mxu0 %v980
        %1012 = vmatpush1.msra.mxu0 %v979
        %1013 = vmatprep.subr.mxu0 %v982
        %1014 = vmatpush1.msra.mxu0 %v981
        %1015 = vmatprep.subr.mxu0 %v984
        %1016 = vmatpush1.msra.mxu0 %v983
        %1017 = vmatprep.subr.mxu0 %v986
        %1018 = vmatpush1.msra.mxu0 %v985
        %1019 = vmatprep.subr.mxu0 %v988
        %1020 = vmatpush1.msra.mxu0 %v987
        %1021 = vmatprep.subr.mxu0 %v990
        %1022 = vmatpush1.msra.mxu0 %v989
        %1023 = vmatprep.subr.mxu0 0.0
        %1024 = vmatpush1.msra.mxu0 0.0
        %1025 = vmatprep.subr.mxu0 0.0
        %1026 = vmatpush1.msra.mxu0 0.0
        %1027 = vmatprep.subr.mxu0 0.0
        %1028 = vmatpush1.msra.mxu0 0.0
        %1029 = vmatprep.subr.mxu0 0.0
        %1030 = vmatpush1.msra.mxu0 0.0
        %1031 = vmatprep.subr.mxu0 0.0
        %1032 = vmatpush1.msra.mxu0 0.0
        %1033 = vmatprep.subr.mxu0 0.0
        %1034 = vmatpush1.msra.mxu0 0.0
        %1035 = vmatprep.subr.mxu0 0.0
        %1036 = vmatpush1.msra.mxu0 0.0
        %1037 = vmatprep.subr.mxu0 0.0
        %1038 = vmatpush1.msra.mxu0 0.0
        %1039 = vmatprep.subr.mxu0 0.0
        %1040 = vmatpush1.msra.mxu0 0.0
        %1041 = vmatprep.subr.mxu0 0.0
        %1042 = vmatpush1.msra.mxu0 0.0
        %1043 = vmatprep.subr.mxu0 0.0
        %1044 = vmatpush1.msra.mxu0 0.0
        %1045 = vmatprep.subr.mxu0 0.0
        %1046 = vmatpush1.msra.mxu0 0.0
        %1047 = vmatprep.subr.mxu0 0.0
        %1048 = vmatpush1.msra.mxu0 0.0
        %1049 = vmatprep.subr.mxu0 0.0
        %1050 = vmatpush1.msra.mxu0 0.0
        %1051 = vmatprep.subr.mxu0 0.0
        %1052 = vmatpush1.msra.mxu0 0.0
        %1053 = vmatprep.subr.mxu0 0.0
        %1054 = vmatpush1.msra.mxu0 0.0
        %1055 = vmatprep.mubr.f32.mxu0 0.0
        %1056 = vmatmul.mubr.f32.gmra.mrb[0].mxu0 %v958
        %v1057 = vpop.f32.mrb[0].mxu0
        %v1058 = vadd.f32 0.0, %v1057
        %v1059 = vpop.f32.mrb[0].mxu0
        %v1060 = vadd.f32 0.0, %v1059
        %1061 = vdwg.mxu0
        %1062 = vst [vmem:[%s137] sm:$0xff] %v1058
        %1063 = vst [vmem:[%s137 + $0x8] sm:$0xff] %v1060
        %s1064 = sand.u32 %s71, 1
        %s1065 = scalar_lea.sflag [#allocation4], %s1064
        %s1066 = sand.u32 %s71, 1
        %s1067 = smul.addr %s1066, 16
        %s1068 = scalar_lea.vmem [#allocation3], %s1067
        // Predicated region
        $region29: #{tpu_custom_call.1} parent=27 // pred_check
          %p1069 = pneg %p81
        $region30: #{tpu_custom_call.1} parent=27 // pred_check_branch
          %1071 = sbr.rel (%p1069) target = $region32
        $region31: #{tpu_custom_call.1} parent=27 // pred_region
          %s1072 = smul.u32 2, %s16
          %s1074 = ssub.s32 256, 256
          %1075 = vsyncadd %s1065, %s1074
          %s1076 = smul.addr %s1072, 128
          %s1077 = scalar_lea.hbm %s2, %s1076
          %s1079 = sshll.u32 %s1068, 4
          %s1080 = int_to_ptr.vmem [resolvable:$true] %s1079
          %1082 = dma.vmem_to_hbm [thread:$0]  %s1080, 256, %s1077, %s1065
        $region32: #{tpu_custom_call.1} parent=27 // pred_fallthru
          _
      $region28: #{tpu_custom_call.1} parent=5 // pred_fallthru
        _
      %p1083 = scmp.le.s32.totalorder 2, %s11
      // Predicated region
      $region33: #{tpu_custom_call.1} parent=5 // pred_check
        %p1084 = pneg %p1083
      $region34: #{tpu_custom_call.1} parent=5 // pred_check_branch
        %1086 = sbr.rel (%p1084) target = $region36
      $region35: #{tpu_custom_call.1} parent=5 // pred_region
        %s1087 = ssub.s32 %s11, 2
        // Predicated region
        $region37: #{tpu_custom_call.1} parent=35 // pred_check
          %p1088 = pneg %p87
        $region38: #{tpu_custom_call.1} parent=35 // pred_check_branch
          %1090 = sbr.rel (%p1088) target = $region40
        $region39: #{tpu_custom_call.1} parent=35 // pred_region
          %s1091 = sand.u32 %s72, 1
          %s1092 = scalar_lea.sflag [#allocation4], %s1091
          %s1093 = sand.u32 %s72, 1
          %s1094 = smul.addr %s1093, 16
          %s1095 = scalar_lea.vmem [#allocation3], %s1094
          %1096 = dma.done %s1092, 256
        $region40: #{tpu_custom_call.1} parent=35 // pred_fallthru
          _
      $region36: #{tpu_custom_call.1} parent=5 // pred_fallthru
        _
    $region6: #{tpu_custom_call.1} parent=1 // loop_footer
      %s15 = sadd.s32 1, %s11
    $region7: #{tpu_custom_call.1} parent=1 // loop_footer_branch
      %10 = sbr.rel target = $region3
    $region8: #{tpu_custom_call.1} parent=1 // loop_exit
      _
    %1097 = vsyncpa [#allocation4], 1
    %s1098 = scalar_lea.sflag [#allocation4], 1
    %1099 = vsyncpa %s1098, 1

// kernel: tpu_custom_call.1
$region0: #{tpu_custom_call.1}
  #allocation0 [shape = 'u32[]', space=smem, size = 0x4, offset = 0x4, fixed_abs, tag = 'smem constant byte address 0x4 - core index']
  #allocation1 [shape = 'u32[144,128]{1,0:T(1,128)}', space=vmem, size = 0x12000, scoped, tag = 'internal scratch']
  #allocation2 [shape = 'f32[128,256]{1,0:T(8,128)}', space=vmem, size = 0x20000, scoped, tag = 'scratch operand']
  %s0 = inlined_call_operand.hbm [shape: f32[16,512], index: 0, kind: input, shape index: {}]
  %s1 = inlined_call_operand.hbm [shape: f32[4,64,128], index: 1, kind: input, shape index: {}]
  %s2 = inlined_call_operand.hbm [shape: f32[8,512], index: 2, kind: output, shape index: {}]
  %s3 = sld [smem:[#allocation0]]
  $region49: #{tpu_custom_call.1} parent=0
    _
  %s5 = ssub.s32 1, %s3
  %s6 = scalar_select 0, %s5, %s3
  $region1: #{tpu_custom_call.1} parent=0
    #allocation3 [shape = 'u8[32768]{0}', space=vmem, size = 0x8000, scoped, tag = 'input window, operand 0']
    #allocation4 [shape = 's32[2]{0}', space=sflag, size = 0x8, scoped, tag = 'scoped memory for tpu_custom_call.1']
    #allocation5 [shape = 's32[2]{0}', space=sflag, size = 0x8, scoped, tag = 'scoped memory for tpu_custom_call.1']
    #allocation6 [shape = 'u8[131072]{0}', space=vmem, size = 0x20000, scoped, tag = 'input window, operand 1, single buffered']
    #allocation7 [shape = 's32[1]{0}', space=sflag, size = 0x4, scoped, tag = 'scoped memory for tpu_custom_call.1']
    #allocation8 [shape = 'u8[16384]{0}', space=vmem, size = 0x4000, scoped, tag = 'output window, operand 0']
    %7 = vsyncpa [#allocation4], 0
    %s8 = scalar_lea.sflag [#allocation4], 1
    %9 = vsyncpa %s8, 0
    %10 = vsyncpa [#allocation7], 0
    %11 = vsyncpa [#allocation5], 0
    %s12 = scalar_lea.sflag [#allocation5], 1
    %13 = vsyncpa %s12, 0
    loop: start=0, step=1, limit=4
    $region2: #{tpu_custom_call.1} parent=1 // loop_pre_header
      _
    $region3: #{tpu_custom_call.1} parent=1 // loop_header
      %s15 = sphi 0, %s19
      %p16 = scmp.ge.s32.totalorder %s15, 4
      %s25 = sphi 0, %s27
      %s28 = sphi 0, %s25
      %s29 = sphi 0, %s28
      %s45 = sphi 0, %s29
      %s49 = sphi 0, %s49
      %s51 = sphi 0, %s49
      %s52 = sphi 0, %s51
      %s66 = sphi 0, %s52
      %s72 = sphi 0, %s74
      %s75 = sphi 0, %s72
      %s76 = sphi 0, %s75
      %s92 = sphi 0, %s76
    $region4: #{tpu_custom_call.1} parent=1 // loop_header_branch
      %18 = sbr.rel (%p16) target = $region8
    $region5: #{tpu_custom_call.1} parent=1 // loop_body
      %s20 = ssub.s32 %s15, 1
      %s21 = ssub.s32 %s15, 2
      %s22 = sadd.s32 %s15, 1
      %s23 = ssub.s32 %s15, %s22
      %p24 = scmp.eq.s32.totalorder %s23, 0
      %s26 = sadd.s32 %s25, 1
      %s27 = scalar_select %p24, %s25, %s26
      %p30 = pneg %p24
      %p31 = scmp.eq.s32.totalorder %s15, 1
      %p32 = por %p30, %p31
      %p33 = scmp.ne.s32.totalorder %s25, %s28
      %p34 = scmp.eq.s32.totalorder %s15, 0
      %p35 = por %p33, %p34
      %p36 = scmp.ne.s32.totalorder %s25, %s28
      %p37 = scmp.eq.s32.totalorder %s20, 1
      %p38 = por %p36, %p37
      %p39 = scmp.ne.s32.totalorder %s28, %s29
      %p40 = scmp.eq.s32.totalorder %s20, 0
      %p41 = por %p39, %p40
      %p42 = scmp.ne.s32.totalorder %s28, %s29
      %p43 = scmp.eq.s32.totalorder %s21, 1
      %p44 = por %p42, %p43
      %p46 = scmp.ne.s32.totalorder %s29, %s45
      %p47 = scmp.eq.s32.totalorder %s21, 0
      %p48 = por %p46, %p47
      %s50 = sadd.s32 %s49, 1
      %p53 = scmp.eq.s32.totalorder %s15, 1
      %p54 = scmp.ne.s32.totalorder %s49, %s51
      %p55 = scmp.eq.s32.totalorder %s15, 0
      %p56 = por %p54, %p55
      %p57 = scmp.ne.s32.totalorder %s49, %s51
      %p58 = scmp.eq.s32.totalorder %s20, 1
      %p59 = por %p57, %p58
      %p60 = scmp.ne.s32.totalorder %s51, %s52
      %p61 = scmp.eq.s32.totalorder %s20, 0
      %p62 = por %p60, %p61
      %p63 = scmp.ne.s32.totalorder %s51, %s52
      %p64 = scmp.eq.s32.totalorder %s21, 1
      %p65 = por %p63, %p64
      %p67 = scmp.ne.s32.totalorder %s52, %s66
      %p68 = scmp.eq.s32.totalorder %s21, 0
      %p69 = por %p67, %p68
      %s70 = ssub.s32 %s15, %s22
      %p71 = scmp.eq.s32.totalorder %s70, 0
      %s73 = sadd.s32 %s72, 1
      %s74 = scalar_select %p71, %s72, %s73
      %p77 = pneg %p71
      %p78 = scmp.eq.s32.totalorder %s15, 1
      %p79 = por %p77, %p78
      %p80 = scmp.ne.s32.totalorder %s72, %s75
      %p81 = scmp.eq.s32.totalorder %s15, 0
      %p82 = por %p80, %p81
      %p83 = scmp.ne.s32.totalorder %s72, %s75
      %p84 = scmp.eq.s32.totalorder %s20, 1
      %p85 = por %p83, %p84
      %p86 = scmp.ne.s32.totalorder %s75, %s76
      %p87 = scmp.eq.s32.totalorder %s20, 0
      %p88 = por %p86, %p87
      %p89 = scmp.ne.s32.totalorder %s75, %s76
      %p90 = scmp.eq.s32.totalorder %s21, 1
      %p91 = por %p89, %p90
      %p93 = scmp.ne.s32.totalorder %s76, %s92
      %p94 = scmp.eq.s32.totalorder %s21, 0
      %p95 = por %p93, %p94
      %p96 = scmp.le.s32.totalorder 1, %s15
      %p97 = scmp.lt.s32.totalorder %s15, 3
      %p98 = pnand %p96, %p97
      %p99 = pneg %p98
      // Predicated region
      $region9: #{tpu_custom_call.1} parent=5 // pred_check
        _
      $region10: #{tpu_custom_call.1} parent=5 // pred_check_branch
        %101 = sbr.rel (%p98) target = $region12
      $region11: #{tpu_custom_call.1} parent=5 // pred_region
        %s102 = ssub.s32 %s15, 1
        // Predicated region
        $region13: #{tpu_custom_call.1} parent=11 // pred_check
          %p103 = pneg %p62
        $region14: #{tpu_custom_call.1} parent=11 // pred_check_branch
          %105 = sbr.rel (%p103) target = $region16
        $region15: #{tpu_custom_call.1} parent=11 // pred_region
          %s107 = ssub.s32 4096, 4096
          %108 = vsyncadd [#allocation7], %s107
          %s109 = sshll.u32 [#allocation6], 4
          %s110 = int_to_ptr.vmem [resolvable:$true] %s109
          %115 = dma.hbm_to_vmem [thread:$0]  %s1, 4096, %s110, [#allocation7], 128, 128, 8
        $region16: #{tpu_custom_call.1} parent=11 // pred_fallthru
          _
      $region12: #{tpu_custom_call.1} parent=5 // pred_fallthru
        _
      %p116 = scmp.lt.s32.totalorder %s15, 2
      // Predicated region
      $region17: #{tpu_custom_call.1} parent=5 // pred_check
        %p117 = pneg %p116
      $region18: #{tpu_custom_call.1} parent=5 // pred_check_branch
        %119 = sbr.rel (%p117) target = $region20
      $region19: #{tpu_custom_call.1} parent=5 // pred_region
        // Predicated region
        $region21: #{tpu_custom_call.1} parent=19 // pred_check
          %p120 = pneg %p35
        $region22: #{tpu_custom_call.1} parent=19 // pred_check_branch
          %122 = sbr.rel (%p120) target = $region24
        $region23: #{tpu_custom_call.1} parent=19 // pred_region
          %s123 = sand.u32 %s25, 1
          %s124 = scalar_lea.sflag [#allocation4], %s123
          %s125 = sand.u32 %s25, 1
          %s126 = smul.addr %s125, 32
          %s127 = scalar_lea.vmem [#allocation3], %s126
          %s128 = smul.u32 2, %s15
          %s130 = ssub.s32 512, 512
          %131 = vsyncadd %s124, %s130
          %s132 = smul.addr %s128, 128
          %s133 = scalar_lea.hbm %s0, %s132
          %s134 = sshll.u32 %s127, 4
          %s135 = int_to_ptr.vmem [resolvable:$true] %s134
          %140 = dma.hbm_to_vmem [thread:$0]  %s133, 512, %s135, %s124, 512, 256, 16
        $region24: #{tpu_custom_call.1} parent=19 // pred_fallthru
          _
      $region20: #{tpu_custom_call.1} parent=5 // pred_fallthru
        _
      %p141 = scmp.le.s32.totalorder 1, %s15
      %p142 = scmp.lt.s32.totalorder %s15, 3
      %p143 = pnand %p141, %p142
      %p144 = pneg %p143
      // Predicated region
      $region25: #{tpu_custom_call.1} parent=5 // pred_check
        _
      $region26: #{tpu_custom_call.1} parent=5 // pred_check_branch
        %146 = sbr.rel (%p143) target = $region28
      $region27: #{tpu_custom_call.1} parent=5 // pred_region
        %s147 = ssub.s32 %s15, 1
        %s148 = sand.u32 %s28, 1
        %s149 = scalar_lea.sflag [#allocation4], %s148
        %s150 = sand.u32 %s28, 1
        %s151 = smul.addr %s150, 32
        %s152 = scalar_lea.vmem [#allocation3], %s151
        // Predicated region
        $region29: #{tpu_custom_call.1} parent=27 // pred_check
          %p153 = pneg %p41
        $region30: #{tpu_custom_call.1} parent=27 // pred_check_branch
          %155 = sbr.rel (%p153) target = $region32
        $region31: #{tpu_custom_call.1} parent=27 // pred_region
          %156 = dma.done %s149, 512
        $region32: #{tpu_custom_call.1} parent=27 // pred_fallthru
          _
        // Predicated region
        $region33: #{tpu_custom_call.1} parent=27 // pred_check
          %p157 = pneg %p62
        $region34: #{tpu_custom_call.1} parent=27 // pred_check_branch
          %159 = sbr.rel (%p157) target = $region36
        $region35: #{tpu_custom_call.1} parent=27 // pred_region
          %160 = dma.done [#allocation7], 4096
        $region36: #{tpu_custom_call.1} parent=27 // pred_fallthru
          _
        %s161 = sand.u32 %s28, 1
        %s162 = scalar_lea.sflag [#allocation4], %s161
        %s163 = sand.u32 %s28, 1
        %s164 = smul.addr %s163, 32
        %s165 = scalar_lea.vmem [#allocation3], %s164
        %p166 = pneg %p41
        %p167 = pneg %p38
        %p168 = pneg %p62
        %p169 = pneg %p59
        %p170 = pneg %p88
        %p171 = pneg %p85
        %s172 = sand.u32 %s75, 1
        %s173 = scalar_lea.sflag [#allocation5], %s172
        %s174 = sand.u32 %s75, 1
        %s175 = smul.addr %s174, 16
        %s176 = scalar_lea.vmem [#allocation8], %s175
        %s177 = smul.u32 2, %s20
        %s178 = smul.u32 2, %s20
        %v179 = vld [vmem:[%s152] sm:$0xff]
        %v180 = vld [vmem:[%s152 + $0x8] sm:$0xff]
        %v181 = vld [vmem:[%s152 + $0x10] sm:$0xff]
        %v182 = vld [vmem:[%s152 + $0x18] sm:$0xff]
        %183 = vst [vmem:[#allocation2] sm:$0xff] 0.0
        %184 = vst [vmem:[#allocation2 + $0x8] sm:$0xff] 0.0
        %185 = vst [vmem:[#allocation2 + $0x10] sm:$0xff] 0.0
        %186 = vst [vmem:[#allocation2 + $0x18] sm:$0xff] 0.0
        %187 = vst [vmem:[#allocation2 + $0x20] sm:$0xff] 0.0
        %188 = vst [vmem:[#allocation2 + $0x28] sm:$0xff] 0.0
        %189 = vst [vmem:[#allocation2 + $0x30] sm:$0xff] 0.0
        %190 = vst [vmem:[#allocation2 + $0x38] sm:$0xff] 0.0
        %191 = vst [vmem:[#allocation2 + $0x40] sm:$0xff] 0.0
        %192 = vst [vmem:[#allocation2 + $0x48] sm:$0xff] 0.0
        %193 = vst [vmem:[#allocation2 + $0x50] sm:$0xff] 0.0
        %194 = vst [vmem:[#allocation2 + $0x58] sm:$0xff] 0.0
        %195 = vst [vmem:[#allocation2 + $0x60] sm:$0xff] 0.0
        %196 = vst [vmem:[#allocation2 + $0x68] sm:$0xff] 0.0
        %197 = vst [vmem:[#allocation2 + $0x70] sm:$0xff] 0.0
        %198 = vst [vmem:[#allocation2 + $0x78] sm:$0xff] 0.0
        %199 = vst [vmem:[#allocation2 + $0x80] sm:$0xff] %v179
        %200 = vst [vmem:[#allocation2 + $0x88] sm:$0xff] %v180
        %201 = vst [vmem:[#allocation2 + $0x90] sm:$0xff] %v181
        %202 = vst [vmem:[#allocation2 + $0x98] sm:$0xff] %v182
        %203 = vst [vmem:[#allocation2 + $0xa0] sm:$0xff] 1.0
        %204 = vst [vmem:[#allocation2 + $0xa8] sm:$0xff] 1.0
        %205 = vst [vmem:[#allocation2 + $0xb0] sm:$0xff] 0.0
        %206 = vst [vmem:[#allocation2 + $0xb8] sm:$0xff] 0.0
        %207 = vst [vmem:[#allocation2 + $0xc0] sm:$0xff] 0.0
        %208 = vst [vmem:[#allocation2 + $0xc8] sm:$0xff] 0.0
        %209 = vst [vmem:[#allocation2 + $0xd0] sm:$0xff] 0.0
        %210 = vst [vmem:[#allocation2 + $0xd8] sm:$0xff] 0.0
        %211 = vst [vmem:[#allocation2 + $0xe0] sm:$0xff] 0.0
        %212 = vst [vmem:[#allocation2 + $0xe8] sm:$0xff] 0.0
        %213 = vst [vmem:[#allocation2 + $0xf0] sm:$0xff] 0.0
        %214 = vst [vmem:[#allocation2 + $0xf8] sm:$0xff] 0.0
        %v215 = vld [vmem:[#allocation6] sm:$0xff]
        %v216 = vld [vmem:[#allocation6 + $0x8] sm:$0xff]
        %v217 = vld [vmem:[#allocation6 + $0x10] sm:$0xff]
        %v218 = vld [vmem:[#allocation6 + $0x18] sm:$0xff]
        %v219 = vld [vmem:[#allocation6 + $0x20] sm:$0xff]
        %v220 = vld [vmem:[#allocation6 + $0x28] sm:$0xff]
        %v221 = vld [vmem:[#allocation6 + $0x30] sm:$0xff]
        %v222 = vld [vmem:[#allocation6 + $0x38] sm:$0xff]
        %v223 = vld [vmem:[#allocation2] sm:$0xff]
        %v224 = vld [vmem:[#allocation2 + $0x8] sm:$0xff]
        %v225 = vld [vmem:[#allocation2 + $0x10] sm:$0xff]
        %v226 = vld [vmem:[#allocation2 + $0x18] sm:$0xff]
        %v227 = vld [vmem:[#allocation2 + $0x20] sm:$0xff]
        %v228 = vld [vmem:[#allocation2 + $0x28] sm:$0xff]
        %v229 = vld [vmem:[#allocation2 + $0x30] sm:$0xff]
        %v230 = vld [vmem:[#allocation2 + $0x38] sm:$0xff]
        %v231 = vld [vmem:[#allocation2 + $0x40] sm:$0xff]
        %v232 = vld [vmem:[#allocation2 + $0x48] sm:$0xff]
        %v233 = vld [vmem:[#allocation2 + $0x50] sm:$0xff]
        %v234 = vld [vmem:[#allocation2 + $0x58] sm:$0xff]
        %v235 = vld [vmem:[#allocation2 + $0x60] sm:$0xff]
        %v236 = vld [vmem:[#allocation2 + $0x68] sm:$0xff]
        %v237 = vld [vmem:[#allocation2 + $0x70] sm:$0xff]
        %v238 = vld [vmem:[#allocation2 + $0x78] sm:$0xff]
        %v239 = vld [vmem:[#allocation2 + $0x80] sm:$0xff]
        %v240 = vld [vmem:[#allocation2 + $0x88] sm:$0xff]
        %v241 = vld [vmem:[#allocation2 + $0x90] sm:$0xff]
        %v242 = vld [vmem:[#allocation2 + $0x98] sm:$0xff]
        %v243 = vld [vmem:[#allocation2 + $0xa0] sm:$0xff]
        %v244 = vld [vmem:[#allocation2 + $0xa8] sm:$0xff]
        %v245 = vld [vmem:[#allocation2 + $0xb0] sm:$0xff]
        %v246 = vld [vmem:[#allocation2 + $0xb8] sm:$0xff]
        %v247 = vld [vmem:[#allocation2 + $0xc0] sm:$0xff]
        %v248 = vld [vmem:[#allocation2 + $0xc8] sm:$0xff]
        %v249 = vld [vmem:[#allocation2 + $0xd0] sm:$0xff]
        %v250 = vld [vmem:[#allocation2 + $0xd8] sm:$0xff]
        %v251 = vld [vmem:[#allocation2 + $0xe0] sm:$0xff]
        %v252 = vld [vmem:[#allocation2 + $0xe8] sm:$0xff]
        %v253 = vld [vmem:[#allocation2 + $0xf0] sm:$0xff]
        %v254 = vld [vmem:[#allocation2 + $0xf8] sm:$0xff]
        %255 = vmatprep.subr.mxu0 %v224
        %256 = vmatpush1.msra.mxu0 %v223
        %257 = vmatprep.subr.mxu0 %v226
        %258 = vmatpush1.msra.mxu0 %v225
        %259 = vmatprep.subr.mxu0 %v228
        %260 = vmatpush1.msra.mxu0 %v227
        %261 = vmatprep.subr.mxu0 %v230
        %262 = vmatpush1.msra.mxu0 %v229
        %263 = vmatprep.subr.mxu0 %v232
        %264 = vmatpush1.msra.mxu0 %v231
        %265 = vmatprep.subr.mxu0 %v234
        %266 = vmatpush1.msra.mxu0 %v233
        %267 = vmatprep.subr.mxu0 %v236
        %268 = vmatpush1.msra.mxu0 %v235
        %269 = vmatprep.subr.mxu0 %v238
        %270 = vmatpush1.msra.mxu0 %v237
        %271 = vmatprep.subr.mxu0 %v240
        %272 = vmatpush1.msra.mxu0 %v239
        %273 = vmatprep.subr.mxu0 %v242
        %274 = vmatpush1.msra.mxu0 %v241
        %275 = vmatprep.subr.mxu0 %v244
        %276 = vmatpush1.msra.mxu0 %v243
        %277 = vmatprep.subr.mxu0 %v246
        %278 = vmatpush1.msra.mxu0 %v245
        %279 = vmatprep.subr.mxu0 %v248
        %280 = vmatpush1.msra.mxu0 %v247
        %281 = vmatprep.subr.mxu0 %v250
        %282 = vmatpush1.msra.mxu0 %v249
        %283 = vmatprep.subr.mxu0 %v252
        %284 = vmatpush1.msra.mxu0 %v251
        %285 = vmatprep.subr.mxu0 %v254
        %286 = vmatpush1.msra.mxu0 %v253
        %287 = vmatprep.subr.mxu0 0.0
        %288 = vmatpush1.msra.mxu0 0.0
        %289 = vmatprep.subr.mxu0 0.0
        %290 = vmatpush1.msra.mxu0 0.0
        %291 = vmatprep.subr.mxu0 0.0
        %292 = vmatpush1.msra.mxu0 0.0
        %293 = vmatprep.subr.mxu0 0.0
        %294 = vmatpush1.msra.mxu0 0.0
        %295 = vmatprep.subr.mxu0 0.0
        %296 = vmatpush1.msra.mxu0 0.0
        %297 = vmatprep.subr.mxu0 0.0
        %298 = vmatpush1.msra.mxu0 0.0
        %299 = vmatprep.subr.mxu0 0.0
        %300 = vmatpush1.msra.mxu0 0.0
        %301 = vmatprep.subr.mxu0 0.0
        %302 = vmatpush1.msra.mxu0 0.0
        %303 = vmatprep.subr.mxu0 0.0
        %304 = vmatpush1.msra.mxu0 0.0
        %305 = vmatprep.subr.mxu0 0.0
        %306 = vmatpush1.msra.mxu0 0.0
        %307 = vmatprep.subr.mxu0 0.0
        %308 = vmatpush1.msra.mxu0 0.0
        %309 = vmatprep.subr.mxu0 0.0
        %310 = vmatpush1.msra.mxu0 0.0
        %311 = vmatprep.subr.mxu0 0.0
        %312 = vmatpush1.msra.mxu0 0.0
        %313 = vmatprep.subr.mxu0 0.0
        %314 = vmatpush1.msra.mxu0 0.0
        %315 = vmatprep.subr.mxu0 0.0
        %316 = vmatpush1.msra.mxu0 0.0
        %317 = vmatprep.subr.mxu0 0.0
        %318 = vmatpush1.msra.mxu0 0.0
        %319 = vmatprep.mubr.f32.mxu0 0.0
        %320 = vmatmul.mubr.f32.gmra.mrb[0].mxu0 %v215
        %v321 = vpop.f32.mrb[0].mxu0
        %v322 = vadd.f32 0.0, %v321
        %v323 = vpop.f32.mrb[0].mxu0
        %v324 = vadd.f32 0.0, %v323
        %325 = vmatprep.mubr.f32.mxu0 0.0
        %326 = vmatmul.mubr.f32.gmra.mrb[0].mxu0 %v216
        %v327 = vpop.f32.mrb[0].mxu0
        %v328 = vadd.f32 0.0, %v327
        %v329 = vpop.f32.mrb[0].mxu0
        %v330 = vadd.f32 0.0, %v329
        %331 = vmatprep.mubr.f32.mxu0 0.0
        %332 = vmatmul.mubr.f32.gmra.mrb[0].mxu0 %v217
        %v333 = vpop.f32.mrb[0].mxu0
        %v334 = vadd.f32 0.0, %v333
        %v335 = vpop.f32.mrb[0].mxu0
        %v336 = vadd.f32 0.0, %v335
        %337 = vmatprep.mubr.f32.mxu0 0.0
        %338 = vmatmul.mubr.f32.gmra.mrb[0].mxu0 %v218
        %v339 = vpop.f32.mrb[0].mxu0
        %v340 = vadd.f32 0.0, %v339
        %v341 = vpop.f32.mrb[0].mxu0
        %v342 = vadd.f32 0.0, %v341
        %343 = vmatprep.mubr.f32.mxu0 0.0
        %344 = vmatmul.mubr.f32.gmra.mrb[0].mxu0 %v219
        %v345 = vpop.f32.mrb[0].mxu0
        %v346 = vadd.f32 0.0, %v345
        %v347 = vpop.f32.mrb[0].mxu0
        %v348 = vadd.f32 0.0, %v347
        %349 = vmatprep.mubr.f32.mxu0 0.0
        %350 = vmatmul.mubr.f32.gmra.mrb[0].mxu0 %v220
        %v351 = vpop.f32.mrb[0].mxu0
        %v352 = vadd.f32 0.0, %v351
        %v353 = vpop.f32.mrb[0].mxu0
        %v354 = vadd.f32 0.0, %v353
        %355 = vmatprep.mubr.f32.mxu0 0.0
        %356 = vmatmul.mubr.f32.gmra.mrb[0].mxu0 %v221
        %v357 = vpop.f32.mrb[0].mxu0
        %v358 = vadd.f32 0.0, %v357
        %v359 = vpop.f32.mrb[0].mxu0
        %v360 = vadd.f32 0.0, %v359
        %361 = vmatprep.mubr.f32.mxu0 0.0
        %362 = vmatmul.mubr.f32.gmra.mrb[0].mxu0 %v222
        %v363 = vpop.f32.mrb[0].mxu0
        %v364 = vadd.f32 0.0, %v363
        %v365 = vpop.f32.mrb[0].mxu0
        %v366 = vadd.f32 0.0, %v365
        %367 = vdwg.mxu0
        %v368 = vmax.f32 %v322, 0.0
        %v369 = vmax.f32 %v324, 0.0
        %v370 = vmax.f32 %v328, 0.0
        %v371 = vmax.f32 %v330, 0.0
        %v372 = vmax.f32 %v334, 0.0
        %v373 = vmax.f32 %v336, 0.0
        %v374 = vmax.f32 %v340, 0.0
        %v375 = vmax.f32 %v342, 0.0
        %v376 = vmax.f32 %v346, 0.0
        %v377 = vmax.f32 %v348, 0.0
        %v378 = vmax.f32 %v352, 0.0
        %v379 = vmax.f32 %v354, 0.0
        %v380 = vmax.f32 %v358, 0.0
        %v381 = vmax.f32 %v360, 0.0
        %v382 = vmax.f32 %v364, 0.0
        %v383 = vmax.f32 %v366, 0.0
        %384 = vst [vmem:[#allocation2] sm:$0xff] %v368
        %385 = vst [vmem:[#allocation2 + $0x8] sm:$0xff] %v369
        %386 = vst [vmem:[#allocation2 + $0x10] sm:$0xff] %v370
        %387 = vst [vmem:[#allocation2 + $0x18] sm:$0xff] %v371
        %388 = vst [vmem:[#allocation2 + $0x20] sm:$0xff] %v372
        %389 = vst [vmem:[#allocation2 + $0x28] sm:$0xff] %v373
        %390 = vst [vmem:[#allocation2 + $0x30] sm:$0xff] %v374
        %391 = vst [vmem:[#allocation2 + $0x38] sm:$0xff] %v375
        %392 = vst [vmem:[#allocation2 + $0x40] sm:$0xff] %v376
        %393 = vst [vmem:[#allocation2 + $0x48] sm:$0xff] %v377
        %394 = vst [vmem:[#allocation2 + $0x50] sm:$0xff] %v378
        %395 = vst [vmem:[#allocation2 + $0x58] sm:$0xff] %v379
        %396 = vst [vmem:[#allocation2 + $0x60] sm:$0xff] %v380
        %397 = vst [vmem:[#allocation2 + $0x68] sm:$0xff] %v381
        %398 = vst [vmem:[#allocation2 + $0x70] sm:$0xff] %v382
        %399 = vst [vmem:[#allocation2 + $0x78] sm:$0xff] %v383
        %s400 = scalar_lea.vmem [#allocation6], 64
        %v401 = vld [vmem:[%s400] sm:$0xff]
        %v402 = vld [vmem:[%s400 + $0x8] sm:$0xff]
        %v403 = vld [vmem:[%s400 + $0x10] sm:$0xff]
        %v404 = vld [vmem:[%s400 + $0x18] sm:$0xff]
        %v405 = vld [vmem:[%s400 + $0x20] sm:$0xff]
        %v406 = vld [vmem:[%s400 + $0x28] sm:$0xff]
        %v407 = vld [vmem:[%s400 + $0x30] sm:$0xff]
        %v408 = vld [vmem:[%s400 + $0x38] sm:$0xff]
        %v409 = vld [vmem:[#allocation2] sm:$0xff]
        %v410 = vld [vmem:[#allocation2 + $0x8] sm:$0xff]
        %v411 = vld [vmem:[#allocation2 + $0x10] sm:$0xff]
        %v412 = vld [vmem:[#allocation2 + $0x18] sm:$0xff]
        %v413 = vld [vmem:[#allocation2 + $0x20] sm:$0xff]
        %v414 = vld [vmem:[#allocation2 + $0x28] sm:$0xff]
        %v415 = vld [vmem:[#allocation2 + $0x30] sm:$0xff]
        %v416 = vld [vmem:[#allocation2 + $0x38] sm:$0xff]
        %v417 = vld [vmem:[#allocation2 + $0x40] sm:$0xff]
        %v418 = vld [vmem:[#allocation2 + $0x48] sm:$0xff]
        %v419 = vld [vmem:[#allocation2 + $0x50] sm:$0xff]
        %v420 = vld [vmem:[#allocation2 + $0x58] sm:$0xff]
        %v421 = vld [vmem:[#allocation2 + $0x60] sm:$0xff]
        %v422 = vld [vmem:[#allocation2 + $0x68] sm:$0xff]
        %v423 = vld [vmem:[#allocation2 + $0x70] sm:$0xff]
        %v424 = vld [vmem:[#allocation2 + $0x78] sm:$0xff]
        %v425 = vld [vmem:[#allocation2 + $0x80] sm:$0xff]
        %v426 = vld [vmem:[#allocation2 + $0x88] sm:$0xff]
        %v427 = vld [vmem:[#allocation2 + $0x90] sm:$0xff]
        %v428 = vld [vmem:[#allocation2 + $0x98] sm:$0xff]
        %v429 = vld [vmem:[#allocation2 + $0xa0] sm:$0xff]
        %v430 = vld [vmem:[#allocation2 + $0xa8] sm:$0xff]
        %v431 = vld [vmem:[#allocation2 + $0xb0] sm:$0xff]
        %v432 = vld [vmem:[#allocation2 + $0xb8] sm:$0xff]
        %v433 = vld [vmem:[#allocation2 + $0xc0] sm:$0xff]
        %v434 = vld [vmem:[#allocation2 + $0xc8] sm:$0xff]
        %v435 = vld [vmem:[#allocation2 + $0xd0] sm:$0xff]
        %v436 = vld [vmem:[#allocation2 + $0xd8] sm:$0xff]
        %v437 = vld [vmem:[#allocation2 + $0xe0] sm:$0xff]
        %v438 = vld [vmem:[#allocation2 + $0xe8] sm:$0xff]
        %v439 = vld [vmem:[#allocation2 + $0xf0] sm:$0xff]
        %v440 = vld [vmem:[#allocation2 + $0xf8] sm:$0xff]
        %441 = vmatprep.subr.mxu0 %v410
        %442 = vmatpush1.msra.mxu0 %v409
        %443 = vmatprep.subr.mxu0 %v412
        %444 = vmatpush1.msra.mxu0 %v411
        %445 = vmatprep.subr.mxu0 %v414
        %446 = vmatpush1.msra.mxu0 %v413
        %447 = vmatprep.subr.mxu0 %v416
        %448 = vmatpush1.msra.mxu0 %v415
        %449 = vmatprep.subr.mxu0 %v418
        %450 = vmatpush1.msra.mxu0 %v417
        %451 = vmatprep.subr.mxu0 %v420
        %452 = vmatpush1.msra.mxu0 %v419
        %453 = vmatprep.subr.mxu0 %v422
        %454 = vmatpush1.msra.mxu0 %v421
        %455 = vmatprep.subr.mxu0 %v424
        %456 = vmatpush1.msra.mxu0 %v423
        %457 = vmatprep.subr.mxu0 %v426
        %458 = vmatpush1.msra.mxu0 %v425
        %459 = vmatprep.subr.mxu0 %v428
        %460 = vmatpush1.msra.mxu0 %v427
        %461 = vmatprep.subr.mxu0 %v430
        %462 = vmatpush1.msra.mxu0 %v429
        %463 = vmatprep.subr.mxu0 %v432
        %464 = vmatpush1.msra.mxu0 %v431
        %465 = vmatprep.subr.mxu0 %v434
        %466 = vmatpush1.msra.mxu0 %v433
        %467 = vmatprep.subr.mxu0 %v436
        %468 = vmatpush1.msra.mxu0 %v435
        %469 = vmatprep.subr.mxu0 %v438
        %470 = vmatpush1.msra.mxu0 %v437
        %471 = vmatprep.subr.mxu0 %v440
        %472 = vmatpush1.msra.mxu0 %v439
        %473 = vmatprep.subr.mxu0 0.0
        %474 = vmatpush1.msra.mxu0 0.0
        %475 = vmatprep.subr.mxu0 0.0
        %476 = vmatpush1.msra.mxu0 0.0
        %477 = vmatprep.subr.mxu0 0.0
        %478 = vmatpush1.msra.mxu0 0.0
        %479 = vmatprep.subr.mxu0 0.0
        %480 = vmatpush1.msra.mxu0 0.0
        %481 = vmatprep.subr.mxu0 0.0
        %482 = vmatpush1.msra.mxu0 0.0
        %483 = vmatprep.subr.mxu0 0.0
        %484 = vmatpush1.msra.mxu0 0.0
        %485 = vmatprep.subr.mxu0 0.0
        %486 = vmatpush1.msra.mxu0 0.0
        %487 = vmatprep.subr.mxu0 0.0
        %488 = vmatpush1.msra.mxu0 0.0
        %489 = vmatprep.subr.mxu0 0.0
        %490 = vmatpush1.msra.mxu0 0.0
        %491 = vmatprep.subr.mxu0 0.0
        %492 = vmatpush1.msra.mxu0 0.0
        %493 = vmatprep.subr.mxu0 0.0
        %494 = vmatpush1.msra.mxu0 0.0
        %495 = vmatprep.subr.mxu0 0.0
        %496 = vmatpush1.msra.mxu0 0.0
        %497 = vmatprep.subr.mxu0 0.0
        %498 = vmatpush1.msra.mxu0 0.0
        %499 = vmatprep.subr.mxu0 0.0
        %500 = vmatpush1.msra.mxu0 0.0
        %501 = vmatprep.subr.mxu0 0.0
        %502 = vmatpush1.msra.mxu0 0.0
        %503 = vmatprep.subr.mxu0 0.0
        %504 = vmatpush1.msra.mxu0 0.0
        %505 = vmatprep.mubr.f32.mxu0 0.0
        %506 = vmatmul.mubr.f32.gmra.mrb[0].mxu0 %v401
        %v507 = vpop.f32.mrb[0].mxu0
        %v508 = vadd.f32 0.0, %v507
        %v509 = vpop.f32.mrb[0].mxu0
        %v510 = vadd.f32 0.0, %v509
        %511 = vmatprep.mubr.f32.mxu0 0.0
        %512 = vmatmul.mubr.f32.gmra.mrb[0].mxu0 %v402
        %v513 = vpop.f32.mrb[0].mxu0
        %v514 = vadd.f32 0.0, %v513
        %v515 = vpop.f32.mrb[0].mxu0
        %v516 = vadd.f32 0.0, %v515
        %517 = vmatprep.mubr.f32.mxu0 0.0
        %518 = vmatmul.mubr.f32.gmra.mrb[0].mxu0 %v403
        %v519 = vpop.f32.mrb[0].mxu0
        %v520 = vadd.f32 0.0, %v519
        %v521 = vpop.f32.mrb[0].mxu0
        %v522 = vadd.f32 0.0, %v521
        %523 = vmatprep.mubr.f32.mxu0 0.0
        %524 = vmatmul.mubr.f32.gmra.mrb[0].mxu0 %v404
        %v525 = vpop.f32.mrb[0].mxu0
        %v526 = vadd.f32 0.0, %v525
        %v527 = vpop.f32.mrb[0].mxu0
        %v528 = vadd.f32 0.0, %v527
        %529 = vmatprep.mubr.f32.mxu0 0.0
        %530 = vmatmul.mubr.f32.gmra.mrb[0].mxu0 %v405
        %v531 = vpop.f32.mrb[0].mxu0
        %v532 = vadd.f32 0.0, %v531
        %v533 = vpop.f32.mrb[0].mxu0
        %v534 = vadd.f32 0.0, %v533
        %535 = vmatprep.mubr.f32.mxu0 0.0
        %536 = vmatmul.mubr.f32.gmra.mrb[0].mxu0 %v406
        %v537 = vpop.f32.mrb[0].mxu0
        %v538 = vadd.f32 0.0, %v537
        %v539 = vpop.f32.mrb[0].mxu0
        %v540 = vadd.f32 0.0, %v539
        %541 = vmatprep.mubr.f32.mxu0 0.0
        %542 = vmatmul.mubr.f32.gmra.mrb[0].mxu0 %v407
        %v543 = vpop.f32.mrb[0].mxu0
        %v544 = vadd.f32 0.0, %v543
        %v545 = vpop.f32.mrb[0].mxu0
        %v546 = vadd.f32 0.0, %v545
        %547 = vmatprep.mubr.f32.mxu0 0.0
        %548 = vmatmul.mubr.f32.gmra.mrb[0].mxu0 %v408
        %v549 = vpop.f32.mrb[0].mxu0
        %v550 = vadd.f32 0.0, %v549
        %v551 = vpop.f32.mrb[0].mxu0
        %v552 = vadd.f32 0.0, %v551
        %553 = vdwg.mxu0
        %v554 = vmax.f32 %v508, 0.0
        %v555 = vmax.f32 %v510, 0.0
        %v556 = vmax.f32 %v514, 0.0
        %v557 = vmax.f32 %v516, 0.0
        %v558 = vmax.f32 %v520, 0.0
        %v559 = vmax.f32 %v522, 0.0
        %v560 = vmax.f32 %v526, 0.0
        %v561 = vmax.f32 %v528, 0.0
        %v562 = vmax.f32 %v532, 0.0
        %v563 = vmax.f32 %v534, 0.0
        %v564 = vmax.f32 %v538, 0.0
        %v565 = vmax.f32 %v540, 0.0
        %v566 = vmax.f32 %v544, 0.0
        %v567 = vmax.f32 %v546, 0.0
        %v568 = vmax.f32 %v550, 0.0
        %v569 = vmax.f32 %v552, 0.0
        %570 = vst [vmem:[#allocation2] sm:$0xff] %v554
        %571 = vst [vmem:[#allocation2 + $0x8] sm:$0xff] %v555
        %572 = vst [vmem:[#allocation2 + $0x10] sm:$0xff] %v556
        %573 = vst [vmem:[#allocation2 + $0x18] sm:$0xff] %v557
        %574 = vst [vmem:[#allocation2 + $0x20] sm:$0xff] %v558
        %575 = vst [vmem:[#allocation2 + $0x28] sm:$0xff] %v559
        %576 = vst [vmem:[#allocation2 + $0x30] sm:$0xff] %v560
        %577 = vst [vmem:[#allocation2 + $0x38] sm:$0xff] %v561
        %578 = vst [vmem:[#allocation2 + $0x40] sm:$0xff] %v562
        %579 = vst [vmem:[#allocation2 + $0x48] sm:$0xff] %v563
        %580 = vst [vmem:[#allocation2 + $0x50] sm:$0xff] %v564
        %581 = vst [vmem:[#allocation2 + $0x58] sm:$0xff] %v565
        %582 = vst [vmem:[#allocation2 + $0x60] sm:$0xff] %v566
        %583 = vst [vmem:[#allocation2 + $0x68] sm:$0xff] %v567
        %584 = vst [vmem:[#allocation2 + $0x70] sm:$0xff] %v568
        %585 = vst [vmem:[#allocation2 + $0x78] sm:$0xff] %v569
        %s586 = scalar_lea.vmem [#allocation6], 128
        %v587 = vld [vmem:[%s586] sm:$0xff]
        %v588 = vld [vmem:[%s586 + $0x8] sm:$0xff]
        %v589 = vld [vmem:[%s586 + $0x10] sm:$0xff]
        %v590 = vld [vmem:[%s586 + $0x18] sm:$0xff]
        %v591 = vld [vmem:[%s586 + $0x20] sm:$0xff]
        %v592 = vld [vmem:[%s586 + $0x28] sm:$0xff]
        %v593 = vld [vmem:[%s586 + $0x30] sm:$0xff]
        %v594 = vld [vmem:[%s586 + $0x38] sm:$0xff]
        %v595 = vld [vmem:[#allocation2] sm:$0xff]
        %v596 = vld [vmem:[#allocation2 + $0x8] sm:$0xff]
        %v597 = vld [vmem:[#allocation2 + $0x10] sm:$0xff]
        %v598 = vld [vmem:[#allocation2 + $0x18] sm:$0xff]
        %v599 = vld [vmem:[#allocation2 + $0x20] sm:$0xff]
        %v600 = vld [vmem:[#allocation2 + $0x28] sm:$0xff]
        %v601 = vld [vmem:[#allocation2 + $0x30] sm:$0xff]
        %v602 = vld [vmem:[#allocation2 + $0x38] sm:$0xff]
        %v603 = vld [vmem:[#allocation2 + $0x40] sm:$0xff]
        %v604 = vld [vmem:[#allocation2 + $0x48] sm:$0xff]
        %v605 = vld [vmem:[#allocation2 + $0x50] sm:$0xff]
        %v606 = vld [vmem:[#allocation2 + $0x58] sm:$0xff]
        %v607 = vld [vmem:[#allocation2 + $0x60] sm:$0xff]
        %v608 = vld [vmem:[#allocation2 + $0x68] sm:$0xff]
        %v609 = vld [vmem:[#allocation2 + $0x70] sm:$0xff]
        %v610 = vld [vmem:[#allocation2 + $0x78] sm:$0xff]
        %v611 = vld [vmem:[#allocation2 + $0x80] sm:$0xff]
        %v612 = vld [vmem:[#allocation2 + $0x88] sm:$0xff]
        %v613 = vld [vmem:[#allocation2 + $0x90] sm:$0xff]
        %v614 = vld [vmem:[#allocation2 + $0x98] sm:$0xff]
        %v615 = vld [vmem:[#allocation2 + $0xa0] sm:$0xff]
        %v616 = vld [vmem:[#allocation2 + $0xa8] sm:$0xff]
        %v617 = vld [vmem:[#allocation2 + $0xb0] sm:$0xff]
        %v618 = vld [vmem:[#allocation2 + $0xb8] sm:$0xff]
        %v619 = vld [vmem:[#allocation2 + $0xc0] sm:$0xff]
        %v620 = vld [vmem:[#allocation2 + $0xc8] sm:$0xff]
        %v621 = vld [vmem:[#allocation2 + $0xd0] sm:$0xff]
        %v622 = vld [vmem:[#allocation2 + $0xd8] sm:$0xff]
        %v623 = vld [vmem:[#allocation2 + $0xe0] sm:$0xff]
        %v624 = vld [vmem:[#allocation2 + $0xe8] sm:$0xff]
        %v625 = vld [vmem:[#allocation2 + $0xf0] sm:$0xff]
        %v626 = vld [vmem:[#allocation2 + $0xf8] sm:$0xff]
        %627 = vmatprep.subr.mxu0 %v596
        %628 = vmatpush1.msra.mxu0 %v595
        %629 = vmatprep.subr.mxu0 %v598
        %630 = vmatpush1.msra.mxu0 %v597
        %631 = vmatprep.subr.mxu0 %v600
        %632 = vmatpush1.msra.mxu0 %v599
        %633 = vmatprep.subr.mxu0 %v602
        %634 = vmatpush1.msra.mxu0 %v601
        %635 = vmatprep.subr.mxu0 %v604
        %636 = vmatpush1.msra.mxu0 %v603
        %637 = vmatprep.subr.mxu0 %v606
        %638 = vmatpush1.msra.mxu0 %v605
        %639 = vmatprep.subr.mxu0 %v608
        %640 = vmatpush1.msra.mxu0 %v607
        %641 = vmatprep.subr.mxu0 %v610
        %642 = vmatpush1.msra.mxu0 %v609
        %643 = vmatprep.subr.mxu0 %v612
        %644 = vmatpush1.msra.mxu0 %v611
        %645 = vmatprep.subr.mxu0 %v614
        %646 = vmatpush1.msra.mxu0 %v613
        %647 = vmatprep.subr.mxu0 %v616
        %648 = vmatpush1.msra.mxu0 %v615
        %649 = vmatprep.subr.mxu0 %v618
        %650 = vmatpush1.msra.mxu0 %v617
        %651 = vmatprep.subr.mxu0 %v620
        %652 = vmatpush1.msra.mxu0 %v619
        %653 = vmatprep.subr.mxu0 %v622
        %654 = vmatpush1.msra.mxu0 %v621
        %655 = vmatprep.subr.mxu0 %v624
        %656 = vmatpush1.msra.mxu0 %v623
        %657 = vmatprep.subr.mxu0 %v626
        %658 = vmatpush1.msra.mxu0 %v625
        %659 = vmatprep.subr.mxu0 0.0
        %660 = vmatpush1.msra.mxu0 0.0
        %661 = vmatprep.subr.mxu0 0.0
        %662 = vmatpush1.msra.mxu0 0.0
        %663 = vmatprep.subr.mxu0 0.0
        %664 = vmatpush1.msra.mxu0 0.0
        %665 = vmatprep.subr.mxu0 0.0
        %666 = vmatpush1.msra.mxu0 0.0
        %667 = vmatprep.subr.mxu0 0.0
        %668 = vmatpush1.msra.mxu0 0.0
        %669 = vmatprep.subr.mxu0 0.0
        %670 = vmatpush1.msra.mxu0 0.0
        %671 = vmatprep.subr.mxu0 0.0
        %672 = vmatpush1.msra.mxu0 0.0
        %673 = vmatprep.subr.mxu0 0.0
        %674 = vmatpush1.msra.mxu0 0.0
        %675 = vmatprep.subr.mxu0 0.0
        %676 = vmatpush1.msra.mxu0 0.0
        %677 = vmatprep.subr.mxu0 0.0
        %678 = vmatpush1.msra.mxu0 0.0
        %679 = vmatprep.subr.mxu0 0.0
        %680 = vmatpush1.msra.mxu0 0.0
        %681 = vmatprep.subr.mxu0 0.0
        %682 = vmatpush1.msra.mxu0 0.0
        %683 = vmatprep.subr.mxu0 0.0
        %684 = vmatpush1.msra.mxu0 0.0
        %685 = vmatprep.subr.mxu0 0.0
        %686 = vmatpush1.msra.mxu0 0.0
        %687 = vmatprep.subr.mxu0 0.0
        %688 = vmatpush1.msra.mxu0 0.0
        %689 = vmatprep.subr.mxu0 0.0
        %690 = vmatpush1.msra.mxu0 0.0
        %691 = vmatprep.mubr.f32.mxu0 0.0
        %692 = vmatmul.mubr.f32.gmra.mrb[0].mxu0 %v587
        %v693 = vpop.f32.mrb[0].mxu0
        %v694 = vadd.f32 0.0, %v693
        %v695 = vpop.f32.mrb[0].mxu0
        %v696 = vadd.f32 0.0, %v695
        %697 = vmatprep.mubr.f32.mxu0 0.0
        %698 = vmatmul.mubr.f32.gmra.mrb[0].mxu0 %v588
        %v699 = vpop.f32.mrb[0].mxu0
        %v700 = vadd.f32 0.0, %v699
        %v701 = vpop.f32.mrb[0].mxu0
        %v702 = vadd.f32 0.0, %v701
        %703 = vmatprep.mubr.f32.mxu0 0.0
        %704 = vmatmul.mubr.f32.gmra.mrb[0].mxu0 %v589
        %v705 = vpop.f32.mrb[0].mxu0
        %v706 = vadd.f32 0.0, %v705
        %v707 = vpop.f32.mrb[0].mxu0
        %v708 = vadd.f32 0.0, %v707
        %709 = vmatprep.mubr.f32.mxu0 0.0
        %710 = vmatmul.mubr.f32.gmra.mrb[0].mxu0 %v590
        %v711 = vpop.f32.mrb[0].mxu0
        %v712 = vadd.f32 0.0, %v711
        %v713 = vpop.f32.mrb[0].mxu0
        %v714 = vadd.f32 0.0, %v713
        %715 = vmatprep.mubr.f32.mxu0 0.0
        %716 = vmatmul.mubr.f32.gmra.mrb[0].mxu0 %v591
        %v717 = vpop.f32.mrb[0].mxu0
        %v718 = vadd.f32 0.0, %v717
        %v719 = vpop.f32.mrb[0].mxu0
        %v720 = vadd.f32 0.0, %v719
        %721 = vmatprep.mubr.f32.mxu0 0.0
        %722 = vmatmul.mubr.f32.gmra.mrb[0].mxu0 %v592
        %v723 = vpop.f32.mrb[0].mxu0
        %v724 = vadd.f32 0.0, %v723
        %v725 = vpop.f32.mrb[0].mxu0
        %v726 = vadd.f32 0.0, %v725
        %727 = vmatprep.mubr.f32.mxu0 0.0
        %728 = vmatmul.mubr.f32.gmra.mrb[0].mxu0 %v593
        %v729 = vpop.f32.mrb[0].mxu0
        %v730 = vadd.f32 0.0, %v729
        %v731 = vpop.f32.mrb[0].mxu0
        %v732 = vadd.f32 0.0, %v731
        %733 = vmatprep.mubr.f32.mxu0 0.0
        %734 = vmatmul.mubr.f32.gmra.mrb[0].mxu0 %v594
        %v735 = vpop.f32.mrb[0].mxu0
        %v736 = vadd.f32 0.0, %v735
        %v737 = vpop.f32.mrb[0].mxu0
        %v738 = vadd.f32 0.0, %v737
        %739 = vdwg.mxu0
        %v740 = vmax.f32 %v694, 0.0
        %v741 = vmax.f32 %v696, 0.0
        %v742 = vmax.f32 %v700, 0.0
        %v743 = vmax.f32 %v702, 0.0
        %v744 = vmax.f32 %v706, 0.0
        %v745 = vmax.f32 %v708, 0.0
        %v746 = vmax.f32 %v712, 0.0
        %v747 = vmax.f32 %v714, 0.0
        %v748 = vmax.f32 %v718, 0.0
        %v749 = vmax.f32 %v720, 0.0
        %v750 = vmax.f32 %v724, 0.0
        %v751 = vmax.f32 %v726, 0.0
        %v752 = vmax.f32 %v730, 0.0
        %v753 = vmax.f32 %v732, 0.0
        %v754 = vmax.f32 %v736, 0.0
        %v755 = vmax.f32 %v738, 0.0
        %756 = vst [vmem:[#allocation2] sm:$0xff] %v740
        %757 = vst [vmem:[#allocation2 + $0x8] sm:$0xff] %v741
        %758 = vst [vmem:[#allocation2 + $0x10] sm:$0xff] %v742
        %759 = vst [vmem:[#allocation2 + $0x18] sm:$0xff] %v743
        %760 = vst [vmem:[#allocation2 + $0x20] sm:$0xff] %v744
        %761 = vst [vmem:[#allocation2 + $0x28] sm:$0xff] %v745
        %762 = vst [vmem:[#allocation2 + $0x30] sm:$0xff] %v746
        %763 = vst [vmem:[#allocation2 + $0x38] sm:$0xff] %v747
        %764 = vst [vmem:[#allocation2 + $0x40] sm:$0xff] %v748
        %765 = vst [vmem:[#allocation2 + $0x48] sm:$0xff] %v749
        %766 = vst [vmem:[#allocation2 + $0x50] sm:$0xff] %v750
        %767 = vst [vmem:[#allocation2 + $0x58] sm:$0xff] %v751
        %768 = vst [vmem:[#allocation2 + $0x60] sm:$0xff] %v752
        %769 = vst [vmem:[#allocation2 + $0x68] sm:$0xff] %v753
        %770 = vst [vmem:[#allocation2 + $0x70] sm:$0xff] %v754
        %771 = vst [vmem:[#allocation2 + $0x78] sm:$0xff] %v755
        %s772 = scalar_lea.vmem [#allocation6], 192
        %v773 = vld [vmem:[%s772] sm:$0xff]
        %v774 = vld [vmem:[#allocation2] sm:$0xff]
        %v775 = vld [vmem:[#allocation2 + $0x8] sm:$0xff]
        %v776 = vld [vmem:[#allocation2 + $0x10] sm:$0xff]
        %v777 = vld [vmem:[#allocation2 + $0x18] sm:$0xff]
        %v778 = vld [vmem:[#allocation2 + $0x20] sm:$0xff]
        %v779 = vld [vmem:[#allocation2 + $0x28] sm:$0xff]
        %v780 = vld [vmem:[#allocation2 + $0x30] sm:$0xff]
        %v781 = vld [vmem:[#allocation2 + $0x38] sm:$0xff]
        %v782 = vld [vmem:[#allocation2 + $0x40] sm:$0xff]
        %v783 = vld [vmem:[#allocation2 + $0x48] sm:$0xff]
        %v784 = vld [vmem:[#allocation2 + $0x50] sm:$0xff]
        %v785 = vld [vmem:[#allocation2 + $0x58] sm:$0xff]
        %v786 = vld [vmem:[#allocation2 + $0x60] sm:$0xff]
        %v787 = vld [vmem:[#allocation2 + $0x68] sm:$0xff]
        %v788 = vld [vmem:[#allocation2 + $0x70] sm:$0xff]
        %v789 = vld [vmem:[#allocation2 + $0x78] sm:$0xff]
        %v790 = vld [vmem:[#allocation2 + $0x80] sm:$0xff]
        %v791 = vld [vmem:[#allocation2 + $0x88] sm:$0xff]
        %v792 = vld [vmem:[#allocation2 + $0x90] sm:$0xff]
        %v793 = vld [vmem:[#allocation2 + $0x98] sm:$0xff]
        %v794 = vld [vmem:[#allocation2 + $0xa0] sm:$0xff]
        %v795 = vld [vmem:[#allocation2 + $0xa8] sm:$0xff]
        %v796 = vld [vmem:[#allocation2 + $0xb0] sm:$0xff]
        %v797 = vld [vmem:[#allocation2 + $0xb8] sm:$0xff]
        %v798 = vld [vmem:[#allocation2 + $0xc0] sm:$0xff]
        %v799 = vld [vmem:[#allocation2 + $0xc8] sm:$0xff]
        %v800 = vld [vmem:[#allocation2 + $0xd0] sm:$0xff]
        %v801 = vld [vmem:[#allocation2 + $0xd8] sm:$0xff]
        %v802 = vld [vmem:[#allocation2 + $0xe0] sm:$0xff]
        %v803 = vld [vmem:[#allocation2 + $0xe8] sm:$0xff]
        %v804 = vld [vmem:[#allocation2 + $0xf0] sm:$0xff]
        %v805 = vld [vmem:[#allocation2 + $0xf8] sm:$0xff]
        %806 = vmatprep.subr.mxu0 %v775
        %807 = vmatpush1.msra.mxu0 %v774
        %808 = vmatprep.subr.mxu0 %v777
        %809 = vmatpush1.msra.mxu0 %v776
        %810 = vmatprep.subr.mxu0 %v779
        %811 = vmatpush1.msra.mxu0 %v778
        %812 = vmatprep.subr.mxu0 %v781
        %813 = vmatpush1.msra.mxu0 %v780
        %814 = vmatprep.subr.mxu0 %v783
        %815 = vmatpush1.msra.mxu0 %v782
        %816 = vmatprep.subr.mxu0 %v785
        %817 = vmatpush1.msra.mxu0 %v784
        %818 = vmatprep.subr.mxu0 %v787
        %819 = vmatpush1.msra.mxu0 %v786
        %820 = vmatprep.subr.mxu0 %v789
        %821 = vmatpush1.msra.mxu0 %v788
        %822 = vmatprep.subr.mxu0 %v791
        %823 = vmatpush1.msra.mxu0 %v790
        %824 = vmatprep.subr.mxu0 %v793
        %825 = vmatpush1.msra.mxu0 %v792
        %826 = vmatprep.subr.mxu0 %v795
        %827 = vmatpush1.msra.mxu0 %v794
        %828 = vmatprep.subr.mxu0 %v797
        %829 = vmatpush1.msra.mxu0 %v796
        %830 = vmatprep.subr.mxu0 %v799
        %831 = vmatpush1.msra.mxu0 %v798
        %832 = vmatprep.subr.mxu0 %v801
        %833 = vmatpush1.msra.mxu0 %v800
        %834 = vmatprep.subr.mxu0 %v803
        %835 = vmatpush1.msra.mxu0 %v802
        %836 = vmatprep.subr.mxu0 %v805
        %837 = vmatpush1.msra.mxu0 %v804
        %838 = vmatprep.subr.mxu0 0.0
        %839 = vmatpush1.msra.mxu0 0.0
        %840 = vmatprep.subr.mxu0 0.0
        %841 = vmatpush1.msra.mxu0 0.0
        %842 = vmatprep.subr.mxu0 0.0
        %843 = vmatpush1.msra.mxu0 0.0
        %844 = vmatprep.subr.mxu0 0.0
        %845 = vmatpush1.msra.mxu0 0.0
        %846 = vmatprep.subr.mxu0 0.0
        %847 = vmatpush1.msra.mxu0 0.0
        %848 = vmatprep.subr.mxu0 0.0
        %849 = vmatpush1.msra.mxu0 0.0
        %850 = vmatprep.subr.mxu0 0.0
        %851 = vmatpush1.msra.mxu0 0.0
        %852 = vmatprep.subr.mxu0 0.0
        %853 = vmatpush1.msra.mxu0 0.0
        %854 = vmatprep.subr.mxu0 0.0
        %855 = vmatpush1.msra.mxu0 0.0
        %856 = vmatprep.subr.mxu0 0.0
        %857 = vmatpush1.msra.mxu0 0.0
        %858 = vmatprep.subr.mxu0 0.0
        %859 = vmatpush1.msra.mxu0 0.0
        %860 = vmatprep.subr.mxu0 0.0
        %861 = vmatpush1.msra.mxu0 0.0
        %862 = vmatprep.subr.mxu0 0.0
        %863 = vmatpush1.msra.mxu0 0.0
        %864 = vmatprep.subr.mxu0 0.0
        %865 = vmatpush1.msra.mxu0 0.0
        %866 = vmatprep.subr.mxu0 0.0
        %867 = vmatpush1.msra.mxu0 0.0
        %868 = vmatprep.subr.mxu0 0.0
        %869 = vmatpush1.msra.mxu0 0.0
        %870 = vmatprep.mubr.f32.mxu0 0.0
        %871 = vmatmul.mubr.f32.gmra.mrb[0].mxu0 %v773
        %v872 = vpop.f32.mrb[0].mxu0
        %v873 = vadd.f32 0.0, %v872
        %v874 = vpop.f32.mrb[0].mxu0
        %v875 = vadd.f32 0.0, %v874
        %876 = vdwg.mxu0
        %877 = vst [vmem:[%s176] sm:$0xff] %v873
        %878 = vst [vmem:[%s176 + $0x8] sm:$0xff] %v875
        %s879 = sand.u32 %s75, 1
        %s880 = scalar_lea.sflag [#allocation5], %s879
        %s881 = sand.u32 %s75, 1
        %s882 = smul.addr %s881, 16
        %s883 = scalar_lea.vmem [#allocation8], %s882
        // Predicated region
        $region37: #{tpu_custom_call.1} parent=27 // pred_check
          %p884 = pneg %p85
        $region38: #{tpu_custom_call.1} parent=27 // pred_check_branch
          %886 = sbr.rel (%p884) target = $region40
        $region39: #{tpu_custom_call.1} parent=27 // pred_region
          %s887 = smul.u32 2, %s20
          %s889 = ssub.s32 256, 256
          %890 = vsyncadd %s880, %s889
          %s891 = smul.addr %s887, 128
          %s892 = scalar_lea.hbm %s2, %s891
          %s894 = sshll.u32 %s883, 4
          %s895 = int_to_ptr.vmem [resolvable:$true] %s894
          %897 = dma.vmem_to_hbm [thread:$0]  %s895, 256, %s892, %s880
        $region40: #{tpu_custom_call.1} parent=27 // pred_fallthru
          _
      $region28: #{tpu_custom_call.1} parent=5 // pred_fallthru
        _
      %p898 = scmp.le.s32.totalorder 2, %s15
      // Predicated region
      $region41: #{tpu_custom_call.1} parent=5 // pred_check
        %p899 = pneg %p898
      $region42: #{tpu_custom_call.1} parent=5 // pred_check_branch
        %901 = sbr.rel (%p899) target = $region44
      $region43: #{tpu_custom_call.1} parent=5 // pred_region
        %s902 = ssub.s32 %s15, 2
        // Predicated region
        $region45: #{tpu_custom_call.1} parent=43 // pred_check
          %p903 = pneg %p91
        $region46: #{tpu_custom_call.1} parent=43 // pred_check_branch
          %905 = sbr.rel (%p903) target = $region48
        $region47: #{tpu_custom_call.1} parent=43 // pred_region
          %s906 = sand.u32 %s76, 1
          %s907 = scalar_lea.sflag [#allocation5], %s906
          %s908 = sand.u32 %s76, 1
          %s909 = smul.addr %s908, 16
          %s910 = scalar_lea.vmem [#allocation8], %s909
          %911 = dma.done %s907, 256
        $region48: #{tpu_custom_call.1} parent=43 // pred_fallthru
          _
      $region44: #{tpu_custom_call.1} parent=5 // pred_fallthru
        _
    $region6: #{tpu_custom_call.1} parent=1 // loop_footer
      %s19 = sadd.s32 1, %s15
    $region7: #{tpu_custom_call.1} parent=1 // loop_footer_branch
      %14 = sbr.rel target = $region3
    $region8: #{tpu_custom_call.1} parent=1 // loop_exit
      _
    %912 = vsyncpa [#allocation4], 1
    %s913 = scalar_lea.sflag [#allocation4], 1
    %914 = vsyncpa %s913, 1
    %915 = vsyncpa [#allocation7], 1
    %916 = vsyncpa [#allocation5], 1
    %s917 = scalar_lea.sflag [#allocation5], 1
    %918 = vsyncpa %s917, 1

</llo_original>
